<compile_context>
chip_gen: v6e
topology: v6e:2x2x1
jax: 0.10.0
libtpu: 0.0.40
codegen_flags: <defaults>
</compile_context>

<pallas_src>
import functools
import numpy as np
import jax
import jax.numpy as jnp
from jax.experimental import pallas as pl
from jax.experimental.pallas import tpu as pltpu


# ---------------------------------------------------------------------------
# Fused kernel: im2col-GEMM conv (+ folded BN) + ReLU + MaxPool(3, s=2, p=1)
# ---------------------------------------------------------------------------
def head_kernel(p_ref, w_ref, shift_ref, o_ref, *, h_out, w_out, cout, h_pool, w_pool):
    """p_ref    : (1, h_out*w_out, 49*cin) bf16  im2col patches for one image
       w_ref    : (49*cin, cout)           bf16  conv weights with BN scale folded (resident)
       shift_ref: (1, cout)                f32   BN shift (resident)
       o_ref    : (1, h_pool, w_pool*cout) f32   pooled output, lane-dense layout
    """
    # Convolution (+ BN scale) as a single MXU GEMM with f32 accumulation.
    acc = jnp.dot(p_ref[0], w_ref[...], preferred_element_type=jnp.float32)   # (hw, cout)
    y = jnp.maximum(acc + shift_ref[...], 0.0)                                # BN shift + ReLU (>= 0)

    # Fused MaxPool2d(kernel=3, stride=2, padding=1).  Padded taps are -inf in PyTorch,
    # so they are simply dropped.  Separable: max over rows {2i-1,2i,2i+1}, then cols.
    yr = y.reshape(h_pool, 2, w_out, cout)              # split conv rows into (pool row, parity)
    r_even, r_odd = yr[:, 0], yr[:, 1]                  # conv rows 2i, 2i+1
    r_up = jnp.concatenate(                             # conv rows 2i-1 (row -1 dropped)
        [jnp.zeros((1, w_out, cout), jnp.float32), r_odd[:-1]], axis=0)
    rmax = jnp.maximum(jnp.maximum(r_even, r_odd), r_up)            # (h_pool, w_out, cout)

    yc = rmax.reshape(h_pool, w_pool, 2, cout)          # split conv cols into (pool col, parity)
    c_left = jnp.concatenate(                           # shifted by one pool col (col -1 dropped)
        [jnp.zeros((h_pool, 1, 2, cout), jnp.float32), yc[:, :-1]], axis=1)
    out = jnp.maximum(jnp.maximum(yc[:, :, 0, :], yc[:, :, 1, :]),  # cols 2j, 2j+1
                      c_left[:, :, 1, :])                           # col 2j-1
    o_ref[0] = out.reshape(h_pool, w_pool * cout).astype(o_ref.dtype)


# ---------------------------------------------------------------------------
# Wrapper
# ---------------------------------------------------------------------------
def head_block_forward(x, conv_w, bn_gamma, bn_beta, bn_mean, bn_var, *, eps=1e-5):
    """x: (N, C_in, H, W) NCHW; conv_w: (C_out, C_in, 7, 7).  Returns NCHW pooled output."""
    n, cin, h, w = x.shape
    cout = conv_w.shape[0]
    assert conv_w.shape == (cout, cin, 7, 7)
    f32 = jnp.float32

    h_out = (h + 2 * 3 - 7) // 2 + 1
    w_out = (w + 2 * 3 - 7) // 2 + 1
    assert h_out % 2 == 0 and w_out % 2 == 0, \
        "TODO(synk): odd conv-output sizes need bottom/right clipping in the fused pool"
    h_pool, w_pool = h_out // 2, w_out // 2
    K = 49 * cin

    # ---- host-side folding: BN (inference) scale into the conv weights ------------------
    scale = bn_gamma.astype(f32) * jax.lax.rsqrt(bn_var.astype(f32) + eps)             # (cout,)
    shift = (bn_beta.astype(f32) - bn_mean.astype(f32) * scale).reshape(1, cout)       # (1, cout)
    w_mat = jnp.transpose(conv_w.astype(f32), (2, 3, 1, 0)).reshape(K, cout)           # (kh,kw,cin) rows
    w_mat = (w_mat * scale[None, :]).astype(jnp.bfloat16)

    # ---- host-side im2col (zero pad 3, stride 2): (N, h_out*w_out, 49*cin), bf16 --------
    x_nhwc = jnp.transpose(x, (0, 2, 3, 1)).astype(jnp.bfloat16)
    xp = jnp.pad(x_nhwc, ((0, 0), (3, 3), (3, 3), (0, 0)))
    taps = [xp[:, kh:kh + 2 * h_out:2, kw:kw + 2 * w_out:2, :]
            for kh in range(7) for kw in range(7)]
    patches = jnp.stack(taps, axis=3).reshape(n, h_out * w_out, K)    # row order = (kh, kw, cin)

    kernel = functools.partial(head_kernel, h_out=h_out, w_out=w_out, cout=cout,
                               h_pool=h_pool, w_pool=w_pool)
    out = pl.pallas_call(
        kernel,
        out_shape=jax.ShapeDtypeStruct((n, h_pool, w_pool * cout), f32),
        grid=(n,),
        in_specs=[
            pl.BlockSpec((1, h_out * w_out, K), lambda i: (i, 0, 0)),
            pl.BlockSpec((K, cout), lambda i: (0, 0)),        # weights stay VMEM-resident
            pl.BlockSpec((1, cout), lambda i: (0, 0)),        # shift stays VMEM-resident
        ],
        out_specs=pl.BlockSpec((1, h_pool, w_pool * cout), lambda i: (i, 0, 0)),
        compiler_params=pltpu.CompilerParams(
            dimension_semantics=("parallel",),
            vmem_limit_bytes=32 * 1024 * 1024),
    )(patches, w_mat, shift)

    out = out.reshape(n, h_pool, w_pool, cout)
    return jnp.transpose(out, (0, 3, 1, 2)).astype(x.dtype)      # NCHW


# ---------------------------------------------------------------------------
# Pure-JAX reference (mirrors the PyTorch forward, eval-mode BN)
# ---------------------------------------------------------------------------
def reference(x, conv_w, gamma, beta, mean, var, eps=1e-5):
    y = jax.lax.conv_general_dilated(
        x, conv_w, window_strides=(2, 2), padding=((3, 3), (3, 3)),
        dimension_numbers=('NCHW', 'OIHW', 'NCHW'),
        precision=jax.lax.Precision.HIGHEST)
    s = gamma * jax.lax.rsqrt(var + eps)
    y = y * s[None, :, None, None] + (beta - mean * s)[None, :, None, None]
    y = jnp.maximum(y, 0.0)
    y = jax.lax.reduce_window(
        y, -jnp.inf, jax.lax.max,
        window_dimensions=(1, 1, 3, 3), window_strides=(1, 1, 2, 2),
        padding=((0, 0), (0, 0), (1, 1), (1, 1)))
    return y


if __name__ == "__main__":
    N, C_IN, C_OUT = 2, 3, 16
    H, W = 32, 32                      # conv out 16x16, pool out 8x8 ; w_pool*C_OUT = 128 lanes

    key = jax.random.PRNGKey(0)
    kx, kw_, kg, kb, km, kv = jax.random.split(key, 6)
    x = jax.random.normal(kx, (N, C_IN, H, W), dtype=jnp.float32)
    conv_w = jax.random.normal(kw_, (C_OUT, C_IN, 7, 7), dtype=jnp.float32) * 0.05
    gamma = 1.0 + 0.1 * jax.random.normal(kg, (C_OUT,), dtype=jnp.float32)
    beta = 0.1 * jax.random.normal(kb, (C_OUT,), dtype=jnp.float32)
    mean = 0.1 * jax.random.normal(km, (C_OUT,), dtype=jnp.float32)
    var = jax.random.uniform(kv, (C_OUT,), dtype=jnp.float32, minval=0.5, maxval=1.5)

    fwd = jax.jit(head_block_forward)
    out = jax.block_until_ready(fwd(x, conv_w, gamma, beta, mean, var))

    ref = reference(x, conv_w, gamma, beta, mean, var)
    assert out.shape == (N, C_OUT, 8, 8), out.shape
    # bf16 inputs / f32 accumulation -> slightly looser tolerance than pure-f32
    np.testing.assert_allclose(np.asarray(out), np.asarray(ref), rtol=2e-2, atol=2e-2)

    print("KERNEL_OK")
</pallas_src>

<mosaic_0001>
module attributes {stable_mosaic.version = 11 : i64} {
  func.func @head_kernel(%arg0: i32, %arg1: memref<1x256x147xbf16, #tpu.memory_space<vmem>>, %arg2: memref<147x16xbf16, #tpu.memory_space<vmem>>, %arg3: memref<1x16xf32, #tpu.memory_space<vmem>>, %arg4: memref<1x8x128xf32, #tpu.memory_space<vmem>>) attributes {dimension_semantics = [#tpu.dimension_semantics<parallel>], iteration_bounds = array<i64: 2>, scalar_prefetch = 0 : i64, scratch_operands = 0 : i64, tpu.core_type = #tpu.core_type<tc>, window_params = [{transform_indices = @transform_0, window_bounds = array<i64: 1, 256, 147>}, {pipeline_mode = #tpu.pipeline_mode<synchronous>, transform_indices = @transform_1, window_bounds = array<i64: 147, 16>}, {pipeline_mode = #tpu.pipeline_mode<synchronous>, transform_indices = @transform_2, window_bounds = array<i64: 1, 16>}, {transform_indices = @transform_3, window_bounds = array<i64: 1, 8, 128>}]} {
    %c0 = arith.constant 0 : index
    %c0_0 = arith.constant 0 : index
    %c0_1 = arith.constant 0 : index
    %0 = vector.load %arg1[%c0, %c0_0, %c0_1] : memref<1x256x147xbf16, #tpu.memory_space<vmem>>, vector<1x256x147xbf16>
    %1 = vector.shape_cast %0 : vector<1x256x147xbf16> to vector<256x147xbf16>
    %c0_2 = arith.constant 0 : index
    %c0_3 = arith.constant 0 : index
    %2 = vector.load %arg2[%c0_2, %c0_3] : memref<147x16xbf16, #tpu.memory_space<vmem>>, vector<147x16xbf16>
    %cst = arith.constant dense<0.000000e+00> : vector<256x16xf32>
    %3 = tpu.matmul %1, %2, %cst {dimension_numbers = #tpu.dot_dimension_numbers<[1], [0], [0], [1], [0, 0, 1, 1], [], []>} : vector<256x147xbf16>, vector<147x16xbf16>, vector<256x16xf32> -> vector<256x16xf32>
    %c0_4 = arith.constant 0 : index
    %c0_5 = arith.constant 0 : index
    %4 = vector.load %arg3[%c0_4, %c0_5] : memref<1x16xf32, #tpu.memory_space<vmem>>, vector<1x16xf32>
    %5 = vector.broadcast %4 : vector<1x16xf32> to vector<256x16xf32>
    %6 = arith.addf %3, %5 : vector<256x16xf32>
    %cst_6 = arith.constant 0.000000e+00 : f32
    %7 = vector.broadcast %cst_6 : f32 to vector<256x16xf32>
    %8 = arith.maximumf %6, %7 : vector<256x16xf32>
    %9 = vector.shape_cast %8 : vector<256x16xf32> to vector<8x2x16x16xf32>
    %10 = vector.extract_strided_slice %9 {offsets = [0, 0, 0, 0], sizes = [8, 1, 16, 16], strides = [1, 1, 1, 1]} : vector<8x2x16x16xf32> to vector<8x1x16x16xf32>
    %11 = vector.shape_cast %10 : vector<8x1x16x16xf32> to vector<8x16x16xf32>
    %12 = vector.extract_strided_slice %9 {offsets = [0, 1, 0, 0], sizes = [8, 1, 16, 16], strides = [1, 1, 1, 1]} : vector<8x2x16x16xf32> to vector<8x1x16x16xf32>
    %13 = vector.shape_cast %12 : vector<8x1x16x16xf32> to vector<8x16x16xf32>
    %cst_7 = arith.constant 0.000000e+00 : f32
    %14 = vector.broadcast %cst_7 : f32 to vector<1x16x16xf32>
    %15 = vector.extract_strided_slice %13 {offsets = [0, 0, 0], sizes = [7, 16, 16], strides = [1, 1, 1]} : vector<8x16x16xf32> to vector<7x16x16xf32>
    %16 = tpu.concatenate %14, %15 in 0 : vector<1x16x16xf32>, vector<7x16x16xf32> -> vector<8x16x16xf32>
    %17 = arith.maximumf %11, %13 : vector<8x16x16xf32>
    %18 = arith.maximumf %17, %16 : vector<8x16x16xf32>
    %19 = vector.shape_cast %18 : vector<8x16x16xf32> to vector<8x8x2x16xf32>
    %cst_8 = arith.constant 0.000000e+00 : f32
    %20 = vector.broadcast %cst_8 : f32 to vector<8x1x2x16xf32>
    %21 = vector.extract_strided_slice %19 {offsets = [0, 0, 0, 0], sizes = [8, 7, 2, 16], strides = [1, 1, 1, 1]} : vector<8x8x2x16xf32> to vector<8x7x2x16xf32>
    %22 = tpu.concatenate %20, %21 in 1 : vector<8x1x2x16xf32>, vector<8x7x2x16xf32> -> vector<8x8x2x16xf32>
    %23 = vector.extract_strided_slice %19 {offsets = [0, 0, 0, 0], sizes = [8, 8, 1, 16], strides = [1, 1, 1, 1]} : vector<8x8x2x16xf32> to vector<8x8x1x16xf32>
    %24 = vector.shape_cast %23 : vector<8x8x1x16xf32> to vector<8x8x16xf32>
    %25 = vector.extract_strided_slice %19 {offsets = [0, 0, 1, 0], sizes = [8, 8, 1, 16], strides = [1, 1, 1, 1]} : vector<8x8x2x16xf32> to vector<8x8x1x16xf32>
    %26 = vector.shape_cast %25 : vector<8x8x1x16xf32> to vector<8x8x16xf32>
    %27 = arith.maximumf %24, %26 : vector<8x8x16xf32>
    %28 = vector.extract_strided_slice %22 {offsets = [0, 0, 1, 0], sizes = [8, 8, 1, 16], strides = [1, 1, 1, 1]} : vector<8x8x2x16xf32> to vector<8x8x1x16xf32>
    %29 = vector.shape_cast %28 : vector<8x8x1x16xf32> to vector<8x8x16xf32>
    %30 = arith.maximumf %27, %29 : vector<8x8x16xf32>
    %31 = vector.shape_cast %30 : vector<8x8x16xf32> to vector<8x128xf32>
    %c0_9 = arith.constant 0 : index
    %c0_10 = arith.constant 0 : index
    %c0_11 = arith.constant 0 : index
    %32 = vector.load %arg4[%c0_9, %c0_10, %c0_11] : memref<1x8x128xf32, #tpu.memory_space<vmem>>, vector<1x8x128xf32>
    %33 = vector.shape_cast %32 : vector<1x8x128xf32> to vector<8x128xf32>
    %34 = vector.shape_cast %31 : vector<8x128xf32> to vector<1x8x128xf32>
    tpu.vector_store %arg4[%c0_9, %c0_10, %c0_11], %34 {strides = array<i32>} : memref<1x8x128xf32, #tpu.memory_space<vmem>>, vector<1x8x128xf32>,
    return
  }
  func.func @transform_0(%arg0: i32) -> (i32, i32, i32) {
    %c0_i32 = arith.constant 0 : i32
    %c0_i32_0 = arith.constant 0 : i32
    %c0_i32_1 = arith.constant 0 : i32
    return %arg0, %c0_i32, %c0_i32_0 : i32, i32, i32
  }
  func.func @transform_1(%arg0: i32) -> (i32, i32) {
    %c0_i32 = arith.constant 0 : i32
    %c0_i32_0 = arith.constant 0 : i32
    %c0_i32_1 = arith.constant 0 : i32
    return %c0_i32, %c0_i32_0 : i32, i32
  }
  func.func @transform_2(%arg0: i32) -> (i32, i32) {
    %c0_i32 = arith.constant 0 : i32
    %c0_i32_0 = arith.constant 0 : i32
    %c0_i32_1 = arith.constant 0 : i32
    return %c0_i32, %c0_i32_0 : i32, i32
  }
  func.func @transform_3(%arg0: i32) -> (i32, i32, i32) {
    %c0_i32 = arith.constant 0 : i32
    %c0_i32_0 = arith.constant 0 : i32
    %c0_i32_1 = arith.constant 0 : i32
    return %arg0, %c0_i32, %c0_i32_0 : i32, i32, i32
  }
}

</mosaic_0001>

<llo_original>
// kernel: head_block_forward.1
$region0: #{head_block_forward.1}
  #allocation0 [shape = 'u32[]', space=smem, size = 0x4, offset = 0x4, fixed_abs, tag = 'smem constant byte address 0x4 - core index']
  #allocation1 [shape = 'u32[144,128]{1,0:T(1,128)}', space=vmem, size = 0x12000, scoped, tag = 'internal scratch']
  %s0 = inlined_call_operand.vmem [shape: bf16[2,256,147], index: 0, kind: input, shape index: {}]
  %s1 = inlined_call_operand.vmem [shape: bf16[147,16], index: 1, kind: input, shape index: {}]
  %s2 = inlined_call_operand.vmem [shape: f32[1,16], index: 2, kind: input, shape index: {}]
  %s3 = inlined_call_operand.vmem [shape: f32[2,8,128], index: 3, kind: output, shape index: {}]
  %s4 = sld [smem:[#allocation0]]
  $region45: #{head_block_forward.1} parent=0
    _
  %s6 = ssub.s32 1, %s4
  %s7 = scalar_select 0, %s6, %s4
  loop: start=0, step=1, limit=4
  $region2: #{head_block_forward.1} parent=0 // loop_pre_header
    _
  $region3: #{head_block_forward.1} parent=0 // loop_header
    %s9 = sphi 0, %s13
    %p10 = scmp.ge.s32.totalorder %s9, 4
    %s19 = sphi 0, %s21
    %s22 = sphi 0, %s19
    %s23 = sphi 0, %s22
    %s39 = sphi 0, %s23
    %s43 = sphi 0, %s43
    %s45 = sphi 0, %s43
    %s46 = sphi 0, %s45
    %s60 = sphi 0, %s46
    %s64 = sphi 0, %s64
    %s66 = sphi 0, %s64
    %s67 = sphi 0, %s66
    %s81 = sphi 0, %s67
    %s87 = sphi 0, %s89
    %s90 = sphi 0, %s87
    %s91 = sphi 0, %s90
    %s107 = sphi 0, %s91
  $region4: #{head_block_forward.1} parent=0 // loop_header_branch
    %12 = sbr.rel (%p10) target = $region8
  $region5: #{head_block_forward.1} parent=0 // loop_body
    %s14 = ssub.s32 %s9, 1
    %s15 = ssub.s32 %s9, 2
    %s16 = sadd.s32 %s9, 1
    %s17 = ssub.s32 %s9, %s16
    %p18 = scmp.eq.s32.totalorder %s17, 0
    %s20 = sadd.s32 %s19, 1
    %s21 = scalar_select %p18, %s19, %s20
    %p24 = pneg %p18
    %p25 = scmp.eq.s32.totalorder %s9, 1
    %p26 = por %p24, %p25
    %p27 = scmp.ne.s32.totalorder %s19, %s22
    %p28 = scmp.eq.s32.totalorder %s9, 0
    %p29 = por %p27, %p28
    %p30 = scmp.ne.s32.totalorder %s19, %s22
    %p31 = scmp.eq.s32.totalorder %s14, 1
    %p32 = por %p30, %p31
    %p33 = scmp.ne.s32.totalorder %s22, %s23
    %p34 = scmp.eq.s32.totalorder %s14, 0
    %p35 = por %p33, %p34
    %p36 = scmp.ne.s32.totalorder %s22, %s23
    %p37 = scmp.eq.s32.totalorder %s15, 1
    %p38 = por %p36, %p37
    %p40 = scmp.ne.s32.totalorder %s23, %s39
    %p41 = scmp.eq.s32.totalorder %s15, 0
    %p42 = por %p40, %p41
    %s44 = sadd.s32 %s43, 1
    %p47 = scmp.eq.s32.totalorder %s9, 1
    %p48 = scmp.ne.s32.totalorder %s43, %s45
    %p49 = scmp.eq.s32.totalorder %s9, 0
    %p50 = por %p48, %p49
    %p51 = scmp.ne.s32.totalorder %s43, %s45
    %p52 = scmp.eq.s32.totalorder %s14, 1
    %p53 = por %p51, %p52
    %p54 = scmp.ne.s32.totalorder %s45, %s46
    %p55 = scmp.eq.s32.totalorder %s14, 0
    %p56 = por %p54, %p55
    %p57 = scmp.ne.s32.totalorder %s45, %s46
    %p58 = scmp.eq.s32.totalorder %s15, 1
    %p59 = por %p57, %p58
    %p61 = scmp.ne.s32.totalorder %s46, %s60
    %p62 = scmp.eq.s32.totalorder %s15, 0
    %p63 = por %p61, %p62
    %s65 = sadd.s32 %s64, 1
    %p68 = scmp.eq.s32.totalorder %s9, 1
    %p69 = scmp.ne.s32.totalorder %s64, %s66
    %p70 = scmp.eq.s32.totalorder %s9, 0
    %p71 = por %p69, %p70
    %p72 = scmp.ne.s32.totalorder %s64, %s66
    %p73 = scmp.eq.s32.totalorder %s14, 1
    %p74 = por %p72, %p73
    %p75 = scmp.ne.s32.totalorder %s66, %s67
    %p76 = scmp.eq.s32.totalorder %s14, 0
    %p77 = por %p75, %p76
    %p78 = scmp.ne.s32.totalorder %s66, %s67
    %p79 = scmp.eq.s32.totalorder %s15, 1
    %p80 = por %p78, %p79
    %p82 = scmp.ne.s32.totalorder %s67, %s81
    %p83 = scmp.eq.s32.totalorder %s15, 0
    %p84 = por %p82, %p83
    %s85 = ssub.s32 %s9, %s16
    %p86 = scmp.eq.s32.totalorder %s85, 0
    %s88 = sadd.s32 %s87, 1
    %s89 = scalar_select %p86, %s87, %s88
    %p92 = pneg %p86
    %p93 = scmp.eq.s32.totalorder %s9, 1
    %p94 = por %p92, %p93
    %p95 = scmp.ne.s32.totalorder %s87, %s90
    %p96 = scmp.eq.s32.totalorder %s9, 0
    %p97 = por %p95, %p96
    %p98 = scmp.ne.s32.totalorder %s87, %s90
    %p99 = scmp.eq.s32.totalorder %s14, 1
    %p100 = por %p98, %p99
    %p101 = scmp.ne.s32.totalorder %s90, %s91
    %p102 = scmp.eq.s32.totalorder %s14, 0
    %p103 = por %p101, %p102
    %p104 = scmp.ne.s32.totalorder %s90, %s91
    %p105 = scmp.eq.s32.totalorder %s15, 1
    %p106 = por %p104, %p105
    %p108 = scmp.ne.s32.totalorder %s91, %s107
    %p109 = scmp.eq.s32.totalorder %s15, 0
    %p110 = por %p108, %p109
    %p111 = scmp.le.s32.totalorder 1, %s9
    %p112 = scmp.lt.s32.totalorder %s9, 3
    %p113 = pnand %p111, %p112
    %p114 = pneg %p113
    // Predicated region
    $region9: #{head_block_forward.1} parent=5 // pred_check
      _
    $region10: #{head_block_forward.1} parent=5 // pred_check_branch
      %116 = sbr.rel (%p113) target = $region12
    $region11: #{head_block_forward.1} parent=5 // pred_region
      %s117 = ssub.s32 %s9, 1
      // Predicated region
      $region13: #{head_block_forward.1} parent=11 // pred_check
        %p118 = pneg %p56
      $region14: #{head_block_forward.1} parent=11 // pred_check_branch
        %120 = sbr.rel (%p118) target = $region16
      $region15: #{head_block_forward.1} parent=11 // pred_region
        _
      $region16: #{head_block_forward.1} parent=11 // pred_fallthru
        _
      // Predicated region
      $region17: #{head_block_forward.1} parent=11 // pred_check
        %p121 = pneg %p77
      $region18: #{head_block_forward.1} parent=11 // pred_check_branch
        %123 = sbr.rel (%p121) target = $region20
      $region19: #{head_block_forward.1} parent=11 // pred_region
        _
      $region20: #{head_block_forward.1} parent=11 // pred_fallthru
        _
    $region12: #{head_block_forward.1} parent=5 // pred_fallthru
      _
    %p124 = scmp.lt.s32.totalorder %s9, 2
    // Predicated region
    $region21: #{head_block_forward.1} parent=5 // pred_check
      %p125 = pneg %p124
    $region22: #{head_block_forward.1} parent=5 // pred_check_branch
      %127 = sbr.rel (%p125) target = $region24
    $region23: #{head_block_forward.1} parent=5 // pred_region
      // Predicated region
      $region25: #{head_block_forward.1} parent=23 // pred_check
        %p128 = pneg %p29
      $region26: #{head_block_forward.1} parent=23 // pred_check_branch
        %130 = sbr.rel (%p128) target = $region28
      $region27: #{head_block_forward.1} parent=23 // pred_region
        %p131 = scmp.lt.s32.totalorder %s9, 1
        %s132 = scalar_select %p131, %s9, 1
        %s133 = smul.addr %s132, 64
        %s134 = smul.addr %s133, 4
        %s135 = scalar_lea.vmem %s0, %s134
      $region28: #{head_block_forward.1} parent=23 // pred_fallthru
        _
    $region24: #{head_block_forward.1} parent=5 // pred_fallthru
      _
    %p136 = scmp.le.s32.totalorder 1, %s9
    %p137 = scmp.lt.s32.totalorder %s9, 3
    %p138 = pnand %p136, %p137
    %p139 = pneg %p138
    // Predicated region
    $region29: #{head_block_forward.1} parent=5 // pred_check
      _
    $region30: #{head_block_forward.1} parent=5 // pred_check_branch
      %141 = sbr.rel (%p138) target = $region32
    $region31: #{head_block_forward.1} parent=5 // pred_region
      %s142 = ssub.s32 %s9, 1
      %p143 = scmp.lt.s32.totalorder %s14, 1
      %s144 = scalar_select %p143, %s14, 1
      %s145 = smul.addr %s144, 64
      %s146 = smul.addr %s145, 4
      %s147 = scalar_lea.vmem %s0, %s146
      %p148 = pneg %p35
      %p149 = pneg %p32
      %p150 = pneg %p56
      %p151 = pneg %p53
      %p152 = pneg %p77
      %p153 = pneg %p74
      %p154 = pneg %p103
      %p155 = pneg %p100
      %p156 = scmp.lt.s32.totalorder %s14, 1
      %s157 = scalar_select %p156, %s14, 1
      %s158 = smul.addr %s157, 8
      %s159 = scalar_lea.vmem %s3, %s158
      %p160 = scmp.lt.s32.totalorder %s14, 1
      %s161 = scalar_select %p160, %s14, 1
      %s162 = smul.addr %s161, 64
      %s163 = smul.addr %s162, 4
      %s164 = scalar_lea.vmem %s0, %s163
      %p165 = scmp.lt.s32.totalorder %s14, 1
      %s166 = scalar_select %p165, %s14, 1
      %s167 = smul.addr %s166, 8
      %s168 = scalar_lea.vmem %s3, %s167
      %v170 = vld [vmem:[%s164] sm:$0xff]
      %v171 = vld [vmem:[%s164 + $0x8] sm:$0xff]
      %v172 = vld [vmem:[%s164 + $0x10] sm:$0xff]
      %v173 = vld [vmem:[%s164 + $0x18] sm:$0xff]
      %v174 = vld [vmem:[%s164 + $0x20] sm:$0xff]
      %v175 = vld [vmem:[%s164 + $0x28] sm:$0xff]
      %v176 = vld [vmem:[%s164 + $0x30] sm:$0xff]
      %v177 = vld [vmem:[%s164 + $0x38] sm:$0xff]
      %v178 = vld [vmem:[%s164 + $0x40] sm:$0xff]
      %v179 = vld [vmem:[%s164 + $0x48] sm:$0xff]
      %v180 = vld [vmem:[%s164 + $0x50] sm:$0xff]
      %v181 = vld [vmem:[%s164 + $0x58] sm:$0xff]
      %v182 = vld [vmem:[%s164 + $0x60] sm:$0xff]
      %v183 = vld [vmem:[%s164 + $0x68] sm:$0xff]
      %v184 = vld [vmem:[%s164 + $0x70] sm:$0xff]
      %v185 = vld [vmem:[%s164 + $0x78] sm:$0xff]
      %v186 = vld [vmem:[%s164 + $0x80] sm:$0xff]
      %v187 = vld [vmem:[%s164 + $0x88] sm:$0xff]
      %v188 = vld [vmem:[%s164 + $0x90] sm:$0xff]
      %v189 = vld [vmem:[%s164 + $0x98] sm:$0xff]
      %v190 = vld [vmem:[%s164 + $0xa0] sm:$0xff]
      %v191 = vld [vmem:[%s164 + $0xa8] sm:$0xff]
      %v192 = vld [vmem:[%s164 + $0xb0] sm:$0xff]
      %v193 = vld [vmem:[%s164 + $0xb8] sm:$0xff]
      %v194 = vld [vmem:[%s164 + $0xc0] sm:$0xff]
      %v195 = vld [vmem:[%s164 + $0xc8] sm:$0xff]
      %v196 = vld [vmem:[%s164 + $0xd0] sm:$0xff]
      %v197 = vld [vmem:[%s164 + $0xd8] sm:$0xff]
      %v198 = vld [vmem:[%s164 + $0xe0] sm:$0xff]
      %v199 = vld [vmem:[%s164 + $0xe8] sm:$0xff]
      %v200 = vld [vmem:[%s164 + $0xf0] sm:$0xff]
      %v201 = vld [vmem:[%s164 + $0xf8] sm:$0xff]
      %v202 = vld [vmem:[%s1] sm:$0xf]
      %v203 = vld [vmem:[%s1 + $0x4] sm:$0xf]
      %v204 = vld [vmem:[%s1 + $0x8] sm:$0xf]
      %v205 = vld [vmem:[%s1 + $0xc] sm:$0xf]
      %v206 = vld [vmem:[%s1 + $0x10] sm:$0xf]
      %v207 = vld [vmem:[%s1 + $0x14] sm:$0xf]
      %v208 = vld [vmem:[%s1 + $0x18] sm:$0xf]
      %v209 = vld [vmem:[%s1 + $0x1c] sm:$0xf]
      %v210 = vld [vmem:[%s1 + $0x20] sm:$0xf]
      %v211 = vld [vmem:[%s1 + $0x24] sm:$0xf]
      %v212 = vld [vmem:[%s1 + $0x28] sm:$0xf]
      %v213 = vld [vmem:[%s1 + $0x2c] sm:$0xf]
      %v214 = vld [vmem:[%s1 + $0x30] sm:$0xf]
      %v215 = vld [vmem:[%s1 + $0x34] sm:$0xf]
      %v216 = vld [vmem:[%s1 + $0x38] sm:$0xf]
      %v217 = vld [vmem:[%s1 + $0x3c] sm:$0xf]
      %v218 = vld [vmem:[%s1 + $0x40] sm:$0xf]
      %v219 = vld [vmem:[%s1 + $0x44] sm:$0xf]
      %v220 = vld [vmem:[%s1 + $0x48] sm:$0x3]
      %v221 = vld [vmem:[%s2] sm:$0x1]
      %v223 = vlaneseq
      %v224 = vshrl.u32 %v223, 7
      %v225 = vsub.s32 0, %v224
      %v226 = vrot.slane %v221, %v225
      %v260 = vunpack.c.l.b16 %v170
      %v261 = vunpack.c.h.b16 %v170
      %v262 = vunpack.c.l.b16 %v171
      %v263 = vunpack.c.h.b16 %v171
      %v264 = vunpack.c.l.b16 %v172
      %v265 = vunpack.c.h.b16 %v172
      %v266 = vunpack.c.l.b16 %v173
      %v267 = vunpack.c.h.b16 %v173
      %v268 = vunpack.c.l.b16 %v174
      %v269 = vunpack.c.h.b16 %v174
      %v270 = vunpack.c.l.b16 %v175
      %v271 = vunpack.c.h.b16 %v175
      %v272 = vunpack.c.l.b16 %v176
      %v273 = vunpack.c.h.b16 %v176
      %v274 = vunpack.c.l.b16 %v177
      %v275 = vunpack.c.h.b16 %v177
      %v276 = vunpack.c.l.b16 %v178
      %v277 = vunpack.c.h.b16 %v178
      %v278 = vunpack.c.l.b16 %v179
      %v279 = vunpack.c.h.b16 %v179
      %v280 = vunpack.c.l.b16 %v180
      %v281 = vunpack.c.h.b16 %v180
      %v282 = vunpack.c.l.b16 %v181
      %v283 = vunpack.c.h.b16 %v181
      %v284 = vunpack.c.l.b16 %v182
      %v285 = vunpack.c.h.b16 %v182
      %v286 = vunpack.c.l.b16 %v183
      %v287 = vunpack.c.h.b16 %v183
      %v288 = vunpack.c.l.b16 %v184
      %v289 = vunpack.c.h.b16 %v184
      %v290 = vunpack.c.l.b16 %v185
      %v291 = vunpack.c.h.b16 %v185
      %v292 = vunpack.c.l.b16 %v186
      %v293 = vunpack.c.h.b16 %v186
      %v294 = vunpack.c.l.b16 %v187
      %v295 = vunpack.c.h.b16 %v187
      %v296 = vunpack.c.l.b16 %v188
      %v297 = vunpack.c.h.b16 %v188
      %v298 = vunpack.c.l.b16 %v189
      %v299 = vunpack.c.h.b16 %v189
      %v300 = vunpack.c.l.b16 %v190
      %v301 = vunpack.c.h.b16 %v190
      %v302 = vunpack.c.l.b16 %v191
      %v303 = vunpack.c.h.b16 %v191
      %v304 = vunpack.c.l.b16 %v192
      %v305 = vunpack.c.h.b16 %v192
      %v306 = vunpack.c.l.b16 %v193
      %v307 = vunpack.c.h.b16 %v193
      %v308 = vunpack.c.l.b16 %v194
      %v309 = vunpack.c.h.b16 %v194
      %v310 = vunpack.c.l.b16 %v195
      %v311 = vunpack.c.h.b16 %v195
      %v312 = vunpack.c.l.b16 %v196
      %v313 = vunpack.c.h.b16 %v196
      %v314 = vunpack.c.l.b16 %v197
      %v315 = vunpack.c.h.b16 %v197
      %v316 = vunpack.c.l.b16 %v198
      %v317 = vunpack.c.h.b16 %v198
      %v318 = vunpack.c.l.b16 %v199
      %v319 = vunpack.c.h.b16 %v199
      %v320 = vunpack.c.l.b16 %v200
      %v321 = vunpack.c.h.b16 %v200
      %v322 = vunpack.c.l.b16 %v201
      %v323 = vunpack.c.h.b16 %v201
      %v324 = vpack.c.b16 %v262, %v260
      %v325 = vpack.c.b16 %v263, %v261
      %v326 = vpack.c.b16 %v266, %v264
      %v327 = vpack.c.b16 %v267, %v265
      %v328 = vpack.c.b16 %v270, %v268
      %v329 = vpack.c.b16 %v271, %v269
      %v330 = vpack.c.b16 %v274, %v272
      %v331 = vpack.c.b16 %v275, %v273
      %v332 = vpack.c.b16 %v278, %v276
      %v333 = vpack.c.b16 %v279, %v277
      %v334 = vpack.c.b16 %v282, %v280
      %v335 = vpack.c.b16 %v283, %v281
      %v336 = vpack.c.b16 %v286, %v284
      %v337 = vpack.c.b16 %v287, %v285
      %v338 = vpack.c.b16 %v290, %v288
      %v339 = vpack.c.b16 %v291, %v289
      %v340 = vpack.c.b16 %v294, %v292
      %v341 = vpack.c.b16 %v295, %v293
      %v342 = vpack.c.b16 %v298, %v296
      %v343 = vpack.c.b16 %v299, %v297
      %v344 = vpack.c.b16 %v302, %v300
      %v345 = vpack.c.b16 %v303, %v301
      %v346 = vpack.c.b16 %v306, %v304
      %v347 = vpack.c.b16 %v307, %v305
      %v348 = vpack.c.b16 %v310, %v308
      %v349 = vpack.c.b16 %v311, %v309
      %v350 = vpack.c.b16 %v314, %v312
      %v351 = vpack.c.b16 %v315, %v313
      %v352 = vpack.c.b16 %v318, %v316
      %v353 = vpack.c.b16 %v319, %v317
      %v354 = vpack.c.b16 %v322, %v320
      %v355 = vpack.c.b16 %v323, %v321
      %v391 = vunpack.c.l.b16 %v202
      %v392 = vunpack.c.l.b16 %v203
      %v393 = vunpack.c.l.b16 %v204
      %v394 = vunpack.c.l.b16 %v205
      %v395 = vunpack.c.l.b16 %v206
      %v396 = vunpack.c.l.b16 %v207
      %v397 = vunpack.c.l.b16 %v208
      %v398 = vunpack.c.l.b16 %v209
      %v399 = vunpack.c.l.b16 %v210
      %v400 = vunpack.c.l.b16 %v211
      %v401 = vunpack.c.l.b16 %v212
      %v402 = vunpack.c.l.b16 %v213
      %v403 = vunpack.c.l.b16 %v214
      %v404 = vunpack.c.l.b16 %v215
      %v405 = vunpack.c.l.b16 %v216
      %v406 = vunpack.c.l.b16 %v217
      %v407 = vunpack.c.l.b16 %v218
      %v408 = vunpack.c.l.b16 %v219
      %v409 = vunpack.c.l.b16 %v220
      %v410 = vpack.c.b16 %v392, %v391
      %v411 = vpack.c.b16 %v394, %v393
      %v412 = vpack.c.b16 %v396, %v395
      %v413 = vpack.c.b16 %v398, %v397
      %v414 = vpack.c.b16 %v400, %v399
      %v415 = vpack.c.b16 %v402, %v401
      %v416 = vpack.c.b16 %v404, %v403
      %v417 = vpack.c.b16 %v406, %v405
      %v418 = vpack.c.b16 %v408, %v407
      %v419 = vpack.c.b16 %v409, %v409
      %vm429 = vcmask 154624
      %v431 = vsel %vm429, %v325, 0
      %v434 = vsel %vm429, %v327, 0
      %v437 = vsel %vm429, %v329, 0
      %v440 = vsel %vm429, %v331, 0
      %v443 = vsel %vm429, %v333, 0
      %v446 = vsel %vm429, %v335, 0
      %v449 = vsel %vm429, %v337, 0
      %v452 = vsel %vm429, %v339, 0
      %v455 = vsel %vm429, %v341, 0
      %v458 = vsel %vm429, %v343, 0
      %v461 = vsel %vm429, %v345, 0
      %v464 = vsel %vm429, %v347, 0
      %v467 = vsel %vm429, %v349, 0
      %v470 = vsel %vm429, %v351, 0
      %v473 = vsel %vm429, %v353, 0
      %v476 = vsel %vm429, %v355, 0
      %vm478 = vcmask 1040384
      %vm479 = vcmask 1041408
      %v480 = vsel %vm478, 4294967295, 65535
      %v481 = vsel %vm479, %v480, 0
      %v483 = vand.u32 %v419, %v481
      %485 = vmatprep.subr.bf16.mxu0 0
      %486 = vmatpush1.bf16.msra.mxu0 %v417
      %487 = vmatprep.subr.bf16.mxu0 0
      %488 = vmatpush1.bf16.msra.mxu0 %v416
      %489 = vmatprep.subr.bf16.mxu0 0
      %490 = vmatpush1.bf16.msra.mxu0 %v415
      %491 = vmatprep.subr.bf16.mxu0 0
      %492 = vmatpush1.bf16.msra.mxu0 %v414
      %493 = vmatprep.subr.bf16.mxu0 0
      %494 = vmatpush1.bf16.msra.mxu0 %v413
      %495 = vmatprep.subr.bf16.mxu0 0
      %496 = vmatpush1.bf16.msra.mxu0 %v412
      %497 = vmatprep.subr.bf16.mxu0 0
      %498 = vmatpush1.bf16.msra.mxu0 %v411
      %499 = vmatprep.subr.bf16.mxu0 0
      %500 = vmatpush1.bf16.msra.mxu0 %v410
      %501 = vmatprep.subr.bf16.mxu0 0
      %502 = vmatpush2.bf16.msra.mxu0 0
      %503 = vmatprep.subr.bf16.mxu0 0
      %504 = vmatpush2.bf16.msra.mxu0 0
      %505 = vmatprep.subr.bf16.mxu0 0
      %506 = vmatpush2.bf16.msra.mxu0 0
      %507 = vmatprep.subr.bf16.mxu0 0
      %508 = vmatpush2.bf16.msra.mxu0 0
      %509 = vmatprep.subr.bf16.mxu0 0
      %510 = vmatpush2.bf16.msra.mxu0 0
      %511 = vmatprep.subr.bf16.mxu0 0
      %512 = vmatpush2.bf16.msra.mxu0 0
      %513 = vmatprep.subr.bf16.mxu0 0
      %514 = vmatpush2.bf16.msra.mxu0 %v483
      %515 = vmatprep.subr.bf16.mxu0 0
      %516 = vmatpush2.bf16.msra.mxu0 %v418
      %517 = vmatprep.mubr.bf16.mxu0 %v431
      %518 = vmatmul.mubr.bf16.gmra.mxu0 %v324
      %v519 = vpop.f32.mrf.mxu0
      %v520 = vadd.f32 %v226, %v519
      %v521 = vpop.f32.mrf.mxu0
      %v522 = vpop.f32.mrf.mxu0
      %v523 = vadd.f32 %v226, %v522
      %v524 = vpop.f32.mrf.mxu0
      %525 = vmatprep.mubr.bf16.mxu0 %v434
      %526 = vmatmul.mubr.bf16.gmra.mxu0 %v326
      %v527 = vpop.f32.mrf.mxu0
      %v528 = vadd.f32 %v226, %v527
      %v529 = vpop.f32.mrf.mxu0
      %v530 = vpop.f32.mrf.mxu0
      %v531 = vadd.f32 %v226, %v530
      %v532 = vpop.f32.mrf.mxu0
      %533 = vmatprep.mubr.bf16.mxu0 %v437
      %534 = vmatmul.mubr.bf16.gmra.mxu0 %v328
      %v535 = vpop.f32.mrf.mxu0
      %v536 = vadd.f32 %v226, %v535
      %v537 = vpop.f32.mrf.mxu0
      %v538 = vpop.f32.mrf.mxu0
      %v539 = vadd.f32 %v226, %v538
      %v540 = vpop.f32.mrf.mxu0
      %541 = vmatprep.mubr.bf16.mxu0 %v440
      %542 = vmatmul.mubr.bf16.gmra.mxu0 %v330
      %v543 = vpop.f32.mrf.mxu0
      %v544 = vadd.f32 %v226, %v543
      %v545 = vpop.f32.mrf.mxu0
      %v546 = vpop.f32.mrf.mxu0
      %v547 = vadd.f32 %v226, %v546
      %v548 = vpop.f32.mrf.mxu0
      %549 = vmatprep.mubr.bf16.mxu0 %v443
      %550 = vmatmul.mubr.bf16.gmra.mxu0 %v332
      %v551 = vpop.f32.mrf.mxu0
      %v552 = vadd.f32 %v226, %v551
      %v553 = vpop.f32.mrf.mxu0
      %v554 = vpop.f32.mrf.mxu0
      %v555 = vadd.f32 %v226, %v554
      %v556 = vpop.f32.mrf.mxu0
      %557 = vmatprep.mubr.bf16.mxu0 %v446
      %558 = vmatmul.mubr.bf16.gmra.mxu0 %v334
      %v559 = vpop.f32.mrf.mxu0
      %v560 = vadd.f32 %v226, %v559
      %v561 = vpop.f32.mrf.mxu0
      %v562 = vpop.f32.mrf.mxu0
      %v563 = vadd.f32 %v226, %v562
      %v564 = vpop.f32.mrf.mxu0
      %565 = vmatprep.mubr.bf16.mxu0 %v449
      %566 = vmatmul.mubr.bf16.gmra.mxu0 %v336
      %v567 = vpop.f32.mrf.mxu0
      %v568 = vadd.f32 %v226, %v567
      %v569 = vpop.f32.mrf.mxu0
      %v570 = vpop.f32.mrf.mxu0
      %v571 = vadd.f32 %v226, %v570
      %v572 = vpop.f32.mrf.mxu0
      %573 = vmatprep.mubr.bf16.mxu0 %v452
      %574 = vmatmul.mubr.bf16.gmra.mxu0 %v338
      %v575 = vpop.f32.mrf.mxu0
      %v576 = vadd.f32 %v226, %v575
      %v577 = vpop.f32.mrf.mxu0
      %v578 = vpop.f32.mrf.mxu0
      %v579 = vadd.f32 %v226, %v578
      %v580 = vpop.f32.mrf.mxu0
      %581 = vmatprep.mubr.bf16.mxu0 %v455
      %582 = vmatmul.mubr.bf16.gmra.mxu0 %v340
      %v583 = vpop.f32.mrf.mxu0
      %v584 = vadd.f32 %v226, %v583
      %v585 = vpop.f32.mrf.mxu0
      %v586 = vpop.f32.mrf.mxu0
      %v587 = vadd.f32 %v226, %v586
      %v588 = vpop.f32.mrf.mxu0
      %589 = vmatprep.mubr.bf16.mxu0 %v458
      %590 = vmatmul.mubr.bf16.gmra.mxu0 %v342
      %v591 = vpop.f32.mrf.mxu0
      %v592 = vadd.f32 %v226, %v591
      %v593 = vpop.f32.mrf.mxu0
      %v594 = vpop.f32.mrf.mxu0
      %v595 = vadd.f32 %v226, %v594
      %v596 = vpop.f32.mrf.mxu0
      %597 = vmatprep.mubr.bf16.mxu0 %v461
      %598 = vmatmul.mubr.bf16.gmra.mxu0 %v344
      %v599 = vpop.f32.mrf.mxu0
      %v600 = vadd.f32 %v226, %v599
      %v601 = vpop.f32.mrf.mxu0
      %v602 = vpop.f32.mrf.mxu0
      %v603 = vadd.f32 %v226, %v602
      %v604 = vpop.f32.mrf.mxu0
      %605 = vmatprep.mubr.bf16.mxu0 %v464
      %606 = vmatmul.mubr.bf16.gmra.mxu0 %v346
      %v607 = vpop.f32.mrf.mxu0
      %v608 = vadd.f32 %v226, %v607
      %v609 = vpop.f32.mrf.mxu0
      %v610 = vpop.f32.mrf.mxu0
      %v611 = vadd.f32 %v226, %v610
      %v612 = vpop.f32.mrf.mxu0
      %613 = vmatprep.mubr.bf16.mxu0 %v467
      %614 = vmatmul.mubr.bf16.gmra.mxu0 %v348
      %v615 = vpop.f32.mrf.mxu0
      %v616 = vadd.f32 %v226, %v615
      %v617 = vpop.f32.mrf.mxu0
      %v618 = vpop.f32.mrf.mxu0
      %v619 = vadd.f32 %v226, %v618
      %v620 = vpop.f32.mrf.mxu0
      %621 = vmatprep.mubr.bf16.mxu0 %v470
      %622 = vmatmul.mubr.bf16.gmra.mxu0 %v350
      %v623 = vpop.f32.mrf.mxu0
      %v624 = vadd.f32 %v226, %v623
      %v625 = vpop.f32.mrf.mxu0
      %v626 = vpop.f32.mrf.mxu0
      %v627 = vadd.f32 %v226, %v626
      %v628 = vpop.f32.mrf.mxu0
      %629 = vmatprep.mubr.bf16.mxu0 %v473
      %630 = vmatmul.mubr.bf16.gmra.mxu0 %v352
      %v631 = vpop.f32.mrf.mxu0
      %v632 = vadd.f32 %v226, %v631
      %v633 = vpop.f32.mrf.mxu0
      %v634 = vpop.f32.mrf.mxu0
      %v635 = vadd.f32 %v226, %v634
      %v636 = vpop.f32.mrf.mxu0
      %637 = vmatprep.mubr.bf16.mxu0 %v476
      %638 = vmatmul.mubr.bf16.gmra.mxu0 %v354
      %v639 = vpop.f32.mrf.mxu0
      %v640 = vadd.f32 %v226, %v639
      %v641 = vpop.f32.mrf.mxu0
      %v642 = vpop.f32.mrf.mxu0
      %v643 = vadd.f32 %v226, %v642
      %v644 = vpop.f32.mrf.mxu0
      %645 = vdwg.mxu0
      %v646 = vmax.f32 %v520, 0.0
      %v647 = vmax.f32 %v523, 0.0
      %v648 = vmax.f32 %v528, 0.0
      %v649 = vmax.f32 %v531, 0.0
      %v650 = vmax.f32 %v536, 0.0
      %v651 = vmax.f32 %v539, 0.0
      %v652 = vmax.f32 %v544, 0.0
      %v653 = vmax.f32 %v547, 0.0
      %v654 = vmax.f32 %v552, 0.0
      %v655 = vmax.f32 %v555, 0.0
      %v656 = vmax.f32 %v560, 0.0
      %v657 = vmax.f32 %v563, 0.0
      %v658 = vmax.f32 %v568, 0.0
      %v659 = vmax.f32 %v571, 0.0
      %v660 = vmax.f32 %v576, 0.0
      %v661 = vmax.f32 %v579, 0.0
      %v662 = vmax.f32 %v584, 0.0
      %v663 = vmax.f32 %v587, 0.0
      %v664 = vmax.f32 %v592, 0.0
      %v665 = vmax.f32 %v595, 0.0
      %v666 = vmax.f32 %v600, 0.0
      %v667 = vmax.f32 %v603, 0.0
      %v668 = vmax.f32 %v608, 0.0
      %v669 = vmax.f32 %v611, 0.0
      %v670 = vmax.f32 %v616, 0.0
      %v671 = vmax.f32 %v619, 0.0
      %v672 = vmax.f32 %v624, 0.0
      %v673 = vmax.f32 %v627, 0.0
      %v674 = vmax.f32 %v632, 0.0
      %v675 = vmax.f32 %v635, 0.0
      %v676 = vmax.f32 %v640, 0.0
      %v677 = vmax.f32 %v643, 0.0
      %v678 = vmax.f32 %v646, %v648
      %v679 = vmax.f32 %v647, %v649
      %v680 = vmax.f32 %v650, %v652
      %v681 = vmax.f32 %v651, %v653
      %v682 = vmax.f32 %v654, %v656
      %v683 = vmax.f32 %v655, %v657
      %v684 = vmax.f32 %v658, %v660
      %v685 = vmax.f32 %v659, %v661
      %v686 = vmax.f32 %v662, %v664
      %v687 = vmax.f32 %v663, %v665
      %v688 = vmax.f32 %v666, %v668
      %v689 = vmax.f32 %v667, %v669
      %v690 = vmax.f32 %v670, %v672
      %v691 = vmax.f32 %v671, %v673
      %v692 = vmax.f32 %v674, %v676
      %v693 = vmax.f32 %v675, %v677
      %v694 = vmax.f32 %v678, 0.0
      %v695 = vmax.f32 %v679, 0.0
      %v696 = vmax.f32 %v680, %v648
      %v697 = vmax.f32 %v681, %v649
      %v698 = vmax.f32 %v682, %v652
      %v699 = vmax.f32 %v683, %v653
      %v700 = vmax.f32 %v684, %v656
      %v701 = vmax.f32 %v685, %v657
      %v702 = vmax.f32 %v686, %v660
      %v703 = vmax.f32 %v687, %v661
      %v704 = vmax.f32 %v688, %v664
      %v705 = vmax.f32 %v689, %v665
      %v706 = vmax.f32 %v690, %v668
      %v707 = vmax.f32 %v691, %v669
      %v708 = vmax.f32 %v692, %v672
      %v709 = vmax.f32 %v693, %v673
      %v726 = vcombine.high %v694, %v694
      %v728 = vunpack.c.l.s4 1983009808
      %v729 = vunpack.c.0.s8 %v728
      %v730 = vlaneseq
      %v731 = vshrl.u32 %v730, 7
      %v732 = vsub.s32 %v729, %v731
      %v733 = vrot.slane %v694, %v732
      %v735 = vunpack.c.l.s4 1983009808
      %v736 = vunpack.c.0.s8 %v735
      %v737 = vlaneseq
      %v738 = vshrl.u32 %v737, 7
      %v739 = vsub.s32 %v736, %v738
      %v740 = vrot.slane %v726, %v739
      %v741 = vcombine.high %v733, %v733
      %v742 = vcombine.high %v740, %v740
      %v743 = vcombine.high %v695, %v695
      %v745 = vunpack.c.l.s4 1983009808
      %v746 = vunpack.c.0.s8 %v745
      %v747 = vlaneseq
      %v748 = vshrl.u32 %v747, 7
      %v749 = vsub.s32 %v746, %v748
      %v750 = vrot.slane %v695, %v749
      %v752 = vunpack.c.l.s4 1983009808
      %v753 = vunpack.c.0.s8 %v752
      %v754 = vlaneseq
      %v755 = vshrl.u32 %v754, 7
      %v756 = vsub.s32 %v753, %v755
      %v757 = vrot.slane %v743, %v756
      %v758 = vcombine.high %v750, %v750
      %v759 = vcombine.high %v757, %v757
      %v760 = vcombine.high %v696, %v696
      %v762 = vunpack.c.l.s4 1983009808
      %v763 = vunpack.c.0.s8 %v762
      %v764 = vlaneseq
      %v765 = vshrl.u32 %v764, 7
      %v766 = vsub.s32 %v763, %v765
      %v767 = vrot.slane %v696, %v766
      %v769 = vunpack.c.l.s4 1983009808
      %v770 = vunpack.c.0.s8 %v769
      %v771 = vlaneseq
      %v772 = vshrl.u32 %v771, 7
      %v773 = vsub.s32 %v770, %v772
      %v774 = vrot.slane %v760, %v773
      %v775 = vcombine.high %v767, %v767
      %v776 = vcombine.high %v774, %v774
      %v777 = vcombine.high %v697, %v697
      %v779 = vunpack.c.l.s4 1983009808
      %v780 = vunpack.c.0.s8 %v779
      %v781 = vlaneseq
      %v782 = vshrl.u32 %v781, 7
      %v783 = vsub.s32 %v780, %v782
      %v784 = vrot.slane %v697, %v783
      %v786 = vunpack.c.l.s4 1983009808
      %v787 = vunpack.c.0.s8 %v786
      %v788 = vlaneseq
      %v789 = vshrl.u32 %v788, 7
      %v790 = vsub.s32 %v787, %v789
      %v791 = vrot.slane %v777, %v790
      %v792 = vcombine.high %v784, %v784
      %v793 = vcombine.high %v791, %v791
      %v794 = vcombine.high %v698, %v698
      %v796 = vunpack.c.l.s4 1983009808
      %v797 = vunpack.c.0.s8 %v796
      %v798 = vlaneseq
      %v799 = vshrl.u32 %v798, 7
      %v800 = vsub.s32 %v797, %v799
      %v801 = vrot.slane %v698, %v800
      %v803 = vunpack.c.l.s4 1983009808
      %v804 = vunpack.c.0.s8 %v803
      %v805 = vlaneseq
      %v806 = vshrl.u32 %v805, 7
      %v807 = vsub.s32 %v804, %v806
      %v808 = vrot.slane %v794, %v807
      %v809 = vcombine.high %v801, %v801
      %v810 = vcombine.high %v808, %v808
      %v811 = vcombine.high %v699, %v699
      %v813 = vunpack.c.l.s4 1983009808
      %v814 = vunpack.c.0.s8 %v813
      %v815 = vlaneseq
      %v816 = vshrl.u32 %v815, 7
      %v817 = vsub.s32 %v814, %v816
      %v818 = vrot.slane %v699, %v817
      %v820 = vunpack.c.l.s4 1983009808
      %v821 = vunpack.c.0.s8 %v820
      %v822 = vlaneseq
      %v823 = vshrl.u32 %v822, 7
      %v824 = vsub.s32 %v821, %v823
      %v825 = vrot.slane %v811, %v824
      %v826 = vcombine.high %v818, %v818
      %v827 = vcombine.high %v825, %v825
      %v828 = vcombine.high %v700, %v700
      %v830 = vunpack.c.l.s4 1983009808
      %v831 = vunpack.c.0.s8 %v830
      %v832 = vlaneseq
      %v833 = vshrl.u32 %v832, 7
      %v834 = vsub.s32 %v831, %v833
      %v835 = vrot.slane %v700, %v834
      %v837 = vunpack.c.l.s4 1983009808
      %v838 = vunpack.c.0.s8 %v837
      %v839 = vlaneseq
      %v840 = vshrl.u32 %v839, 7
      %v841 = vsub.s32 %v838, %v840
      %v842 = vrot.slane %v828, %v841
      %v843 = vcombine.high %v835, %v835
      %v844 = vcombine.high %v842, %v842
      %v845 = vcombine.high %v701, %v701
      %v847 = vunpack.c.l.s4 1983009808
      %v848 = vunpack.c.0.s8 %v847
      %v849 = vlaneseq
      %v850 = vshrl.u32 %v849, 7
      %v851 = vsub.s32 %v848, %v850
      %v852 = vrot.slane %v701, %v851
      %v854 = vunpack.c.l.s4 1983009808
      %v855 = vunpack.c.0.s8 %v854
      %v856 = vlaneseq
      %v857 = vshrl.u32 %v856, 7
      %v858 = vsub.s32 %v855, %v857
      %v859 = vrot.slane %v845, %v858
      %v860 = vcombine.high %v852, %v852
      %v861 = vcombine.high %v859, %v859
      %v862 = vcombine.high %v702, %v702
      %v864 = vunpack.c.l.s4 1983009808
      %v865 = vunpack.c.0.s8 %v864
      %v866 = vlaneseq
      %v867 = vshrl.u32 %v866, 7
      %v868 = vsub.s32 %v865, %v867
      %v869 = vrot.slane %v702, %v868
      %v871 = vunpack.c.l.s4 1983009808
      %v872 = vunpack.c.0.s8 %v871
      %v873 = vlaneseq
      %v874 = vshrl.u32 %v873, 7
      %v875 = vsub.s32 %v872, %v874
      %v876 = vrot.slane %v862, %v875
      %v877 = vcombine.high %v869, %v869
      %v878 = vcombine.high %v876, %v876
      %v879 = vcombine.high %v703, %v703
      %v881 = vunpack.c.l.s4 1983009808
      %v882 = vunpack.c.0.s8 %v881
      %v883 = vlaneseq
      %v884 = vshrl.u32 %v883, 7
      %v885 = vsub.s32 %v882, %v884
      %v886 = vrot.slane %v703, %v885
      %v888 = vunpack.c.l.s4 1983009808
      %v889 = vunpack.c.0.s8 %v888
      %v890 = vlaneseq
      %v891 = vshrl.u32 %v890, 7
      %v892 = vsub.s32 %v889, %v891
      %v893 = vrot.slane %v879, %v892
      %v894 = vcombine.high %v886, %v886
      %v895 = vcombine.high %v893, %v893
      %v896 = vcombine.high %v704, %v704
      %v898 = vunpack.c.l.s4 1983009808
      %v899 = vunpack.c.0.s8 %v898
      %v900 = vlaneseq
      %v901 = vshrl.u32 %v900, 7
      %v902 = vsub.s32 %v899, %v901
      %v903 = vrot.slane %v704, %v902
      %v905 = vunpack.c.l.s4 1983009808
      %v906 = vunpack.c.0.s8 %v905
      %v907 = vlaneseq
      %v908 = vshrl.u32 %v907, 7
      %v909 = vsub.s32 %v906, %v908
      %v910 = vrot.slane %v896, %v909
      %v911 = vcombine.high %v903, %v903
      %v912 = vcombine.high %v910, %v910
      %v913 = vcombine.high %v705, %v705
      %v915 = vunpack.c.l.s4 1983009808
      %v916 = vunpack.c.0.s8 %v915
      %v917 = vlaneseq
      %v918 = vshrl.u32 %v917, 7
      %v919 = vsub.s32 %v916, %v918
      %v920 = vrot.slane %v705, %v919
      %v922 = vunpack.c.l.s4 1983009808
      %v923 = vunpack.c.0.s8 %v922
      %v924 = vlaneseq
      %v925 = vshrl.u32 %v924, 7
      %v926 = vsub.s32 %v923, %v925
      %v927 = vrot.slane %v913, %v926
      %v928 = vcombine.high %v920, %v920
      %v929 = vcombine.high %v927, %v927
      %v930 = vcombine.high %v706, %v706
      %v932 = vunpack.c.l.s4 1983009808
      %v933 = vunpack.c.0.s8 %v932
      %v934 = vlaneseq
      %v935 = vshrl.u32 %v934, 7
      %v936 = vsub.s32 %v933, %v935
      %v937 = vrot.slane %v706, %v936
      %v939 = vunpack.c.l.s4 1983009808
      %v940 = vunpack.c.0.s8 %v939
      %v941 = vlaneseq
      %v942 = vshrl.u32 %v941, 7
      %v943 = vsub.s32 %v940, %v942
      %v944 = vrot.slane %v930, %v943
      %v945 = vcombine.high %v937, %v937
      %v946 = vcombine.high %v944, %v944
      %v947 = vcombine.high %v707, %v707
      %v949 = vunpack.c.l.s4 1983009808
      %v950 = vunpack.c.0.s8 %v949
      %v951 = vlaneseq
      %v952 = vshrl.u32 %v951, 7
      %v953 = vsub.s32 %v950, %v952
      %v954 = vrot.slane %v707, %v953
      %v956 = vunpack.c.l.s4 1983009808
      %v957 = vunpack.c.0.s8 %v956
      %v958 = vlaneseq
      %v959 = vshrl.u32 %v958, 7
      %v960 = vsub.s32 %v957, %v959
      %v961 = vrot.slane %v947, %v960
      %v962 = vcombine.high %v954, %v954
      %v963 = vcombine.high %v961, %v961
      %v964 = vcombine.high %v708, %v708
      %v966 = vunpack.c.l.s4 1983009808
      %v967 = vunpack.c.0.s8 %v966
      %v968 = vlaneseq
      %v969 = vshrl.u32 %v968, 7
      %v970 = vsub.s32 %v967, %v969
      %v971 = vrot.slane %v708, %v970
      %v973 = vunpack.c.l.s4 1983009808
      %v974 = vunpack.c.0.s8 %v973
      %v975 = vlaneseq
      %v976 = vshrl.u32 %v975, 7
      %v977 = vsub.s32 %v974, %v976
      %v978 = vrot.slane %v964, %v977
      %v979 = vcombine.high %v971, %v971
      %v980 = vcombine.high %v978, %v978
      %v981 = vcombine.high %v709, %v709
      %v983 = vunpack.c.l.s4 1983009808
      %v984 = vunpack.c.0.s8 %v983
      %v985 = vlaneseq
      %v986 = vshrl.u32 %v985, 7
      %v987 = vsub.s32 %v984, %v986
      %v988 = vrot.slane %v709, %v987
      %v990 = vunpack.c.l.s4 1983009808
      %v991 = vunpack.c.0.s8 %v990
      %v992 = vlaneseq
      %v993 = vshrl.u32 %v992, 7
      %v994 = vsub.s32 %v991, %v993
      %v995 = vrot.slane %v981, %v994
      %v996 = vcombine.high %v988, %v988
      %v997 = vcombine.high %v995, %v995
      %v1062 = vrot.slane %v733, 7
      %v1063 = vrot.slane %v1062, 2
      %v1064 = vrot.slane %v741, 7
      %v1065 = vrot.slane %v1064, 2
      %v1066 = vrot.slane %v740, 7
      %v1067 = vrot.slane %v1066, 2
      %v1068 = vrot.slane %v742, 7
      %v1069 = vrot.slane %v1068, 2
      %v1070 = vrot.slane %v750, 7
      %v1071 = vrot.slane %v1070, 2
      %v1072 = vrot.slane %v758, 7
      %v1073 = vrot.slane %v1072, 2
      %v1074 = vrot.slane %v757, 7
      %v1075 = vrot.slane %v1074, 2
      %v1076 = vrot.slane %v759, 7
      %v1077 = vrot.slane %v1076, 2
      %v1078 = vrot.slane %v767, 7
      %v1079 = vrot.slane %v1078, 2
      %v1080 = vrot.slane %v775, 7
      %v1081 = vrot.slane %v1080, 2
      %v1082 = vrot.slane %v774, 7
      %v1083 = vrot.slane %v1082, 2
      %v1084 = vrot.slane %v776, 7
      %v1085 = vrot.slane %v1084, 2
      %v1086 = vrot.slane %v784, 7
      %v1087 = vrot.slane %v1086, 2
      %v1088 = vrot.slane %v792, 7
      %v1089 = vrot.slane %v1088, 2
      %v1090 = vrot.slane %v791, 7
      %v1091 = vrot.slane %v1090, 2
      %v1092 = vrot.slane %v793, 7
      %v1093 = vrot.slane %v1092, 2
      %v1094 = vrot.slane %v801, 7
      %v1095 = vrot.slane %v1094, 2
      %v1096 = vrot.slane %v809, 7
      %v1097 = vrot.slane %v1096, 2
      %v1098 = vrot.slane %v808, 7
      %v1099 = vrot.slane %v1098, 2
      %v1100 = vrot.slane %v810, 7
      %v1101 = vrot.slane %v1100, 2
      %v1102 = vrot.slane %v818, 7
      %v1103 = vrot.slane %v1102, 2
      %v1104 = vrot.slane %v826, 7
      %v1105 = vrot.slane %v1104, 2
      %v1106 = vrot.slane %v825, 7
      %v1107 = vrot.slane %v1106, 2
      %v1108 = vrot.slane %v827, 7
      %v1109 = vrot.slane %v1108, 2
      %v1110 = vrot.slane %v835, 7
      %v1111 = vrot.slane %v1110, 2
      %v1112 = vrot.slane %v843, 7
      %v1113 = vrot.slane %v1112, 2
      %v1114 = vrot.slane %v842, 7
      %v1115 = vrot.slane %v1114, 2
      %v1116 = vrot.slane %v844, 7
      %v1117 = vrot.slane %v1116, 2
      %v1118 = vrot.slane %v852, 7
      %v1119 = vrot.slane %v1118, 2
      %v1120 = vrot.slane %v860, 7
      %v1121 = vrot.slane %v1120, 2
      %v1122 = vrot.slane %v859, 7
      %v1123 = vrot.slane %v1122, 2
      %v1124 = vrot.slane %v861, 7
      %v1125 = vrot.slane %v1124, 2
      %v1126 = vrot.slane %v869, 7
      %v1127 = vrot.slane %v1126, 2
      %v1128 = vrot.slane %v877, 7
      %v1129 = vrot.slane %v1128, 2
      %v1130 = vrot.slane %v876, 7
      %v1131 = vrot.slane %v1130, 2
      %v1132 = vrot.slane %v878, 7
      %v1133 = vrot.slane %v1132, 2
      %v1134 = vrot.slane %v886, 7
      %v1135 = vrot.slane %v1134, 2
      %v1136 = vrot.slane %v894, 7
      %v1137 = vrot.slane %v1136, 2
      %v1138 = vrot.slane %v893, 7
      %v1139 = vrot.slane %v1138, 2
      %v1140 = vrot.slane %v895, 7
      %v1141 = vrot.slane %v1140, 2
      %v1142 = vrot.slane %v903, 7
      %v1143 = vrot.slane %v1142, 2
      %v1144 = vrot.slane %v911, 7
      %v1145 = vrot.slane %v1144, 2
      %v1146 = vrot.slane %v910, 7
      %v1147 = vrot.slane %v1146, 2
      %v1148 = vrot.slane %v912, 7
      %v1149 = vrot.slane %v1148, 2
      %v1150 = vrot.slane %v920, 7
      %v1151 = vrot.slane %v1150, 2
      %v1152 = vrot.slane %v928, 7
      %v1153 = vrot.slane %v1152, 2
      %v1154 = vrot.slane %v927, 7
      %v1155 = vrot.slane %v1154, 2
      %v1156 = vrot.slane %v929, 7
      %v1157 = vrot.slane %v1156, 2
      %v1158 = vrot.slane %v937, 7
      %v1159 = vrot.slane %v1158, 2
      %v1160 = vrot.slane %v945, 7
      %v1161 = vrot.slane %v1160, 2
      %v1162 = vrot.slane %v944, 7
      %v1163 = vrot.slane %v1162, 2
      %v1164 = vrot.slane %v946, 7
      %v1165 = vrot.slane %v1164, 2
      %v1166 = vrot.slane %v954, 7
      %v1167 = vrot.slane %v1166, 2
      %v1168 = vrot.slane %v962, 7
      %v1169 = vrot.slane %v1168, 2
      %v1170 = vrot.slane %v961, 7
      %v1171 = vrot.slane %v1170, 2
      %v1172 = vrot.slane %v963, 7
      %v1173 = vrot.slane %v1172, 2
      %v1174 = vrot.slane %v971, 7
      %v1175 = vrot.slane %v1174, 2
      %v1176 = vrot.slane %v979, 7
      %v1177 = vrot.slane %v1176, 2
      %v1178 = vrot.slane %v978, 7
      %v1179 = vrot.slane %v1178, 2
      %v1180 = vrot.slane %v980, 7
      %v1181 = vrot.slane %v1180, 2
      %v1182 = vrot.slane %v988, 7
      %v1183 = vrot.slane %v1182, 2
      %v1184 = vrot.slane %v996, 7
      %v1185 = vrot.slane %v1184, 2
      %v1186 = vrot.slane %v995, 7
      %v1187 = vrot.slane %v1186, 2
      %v1188 = vrot.slane %v997, 7
      %v1189 = vrot.slane %v1188, 2
      %v1254 = vmax.f32 %v733, %v1063
      %v1255 = vmax.f32 %v741, %v1065
      %v1256 = vmax.f32 %v740, %v1067
      %v1257 = vmax.f32 %v742, %v1069
      %v1258 = vmax.f32 %v750, %v1071
      %v1259 = vmax.f32 %v758, %v1073
      %v1260 = vmax.f32 %v757, %v1075
      %v1261 = vmax.f32 %v759, %v1077
      %v1262 = vmax.f32 %v767, %v1079
      %v1263 = vmax.f32 %v775, %v1081
      %v1264 = vmax.f32 %v774, %v1083
      %v1265 = vmax.f32 %v776, %v1085
      %v1266 = vmax.f32 %v784, %v1087
      %v1267 = vmax.f32 %v792, %v1089
      %v1268 = vmax.f32 %v791, %v1091
      %v1269 = vmax.f32 %v793, %v1093
      %v1270 = vmax.f32 %v801, %v1095
      %v1271 = vmax.f32 %v809, %v1097
      %v1272 = vmax.f32 %v808, %v1099
      %v1273 = vmax.f32 %v810, %v1101
      %v1274 = vmax.f32 %v818, %v1103
      %v1275 = vmax.f32 %v826, %v1105
      %v1276 = vmax.f32 %v825, %v1107
      %v1277 = vmax.f32 %v827, %v1109
      %v1278 = vmax.f32 %v835, %v1111
      %v1279 = vmax.f32 %v843, %v1113
      %v1280 = vmax.f32 %v842, %v1115
      %v1281 = vmax.f32 %v844, %v1117
      %v1282 = vmax.f32 %v852, %v1119
      %v1283 = vmax.f32 %v860, %v1121
      %v1284 = vmax.f32 %v859, %v1123
      %v1285 = vmax.f32 %v861, %v1125
      %v1286 = vmax.f32 %v869, %v1127
      %v1287 = vmax.f32 %v877, %v1129
      %v1288 = vmax.f32 %v876, %v1131
      %v1289 = vmax.f32 %v878, %v1133
      %v1290 = vmax.f32 %v886, %v1135
      %v1291 = vmax.f32 %v894, %v1137
      %v1292 = vmax.f32 %v893, %v1139
      %v1293 = vmax.f32 %v895, %v1141
      %v1294 = vmax.f32 %v903, %v1143
      %v1295 = vmax.f32 %v911, %v1145
      %v1296 = vmax.f32 %v910, %v1147
      %v1297 = vmax.f32 %v912, %v1149
      %v1298 = vmax.f32 %v920, %v1151
      %v1299 = vmax.f32 %v928, %v1153
      %v1300 = vmax.f32 %v927, %v1155
      %v1301 = vmax.f32 %v929, %v1157
      %v1302 = vmax.f32 %v937, %v1159
      %v1303 = vmax.f32 %v945, %v1161
      %v1304 = vmax.f32 %v944, %v1163
      %v1305 = vmax.f32 %v946, %v1165
      %v1306 = vmax.f32 %v954, %v1167
      %v1307 = vmax.f32 %v962, %v1169
      %v1308 = vmax.f32 %v961, %v1171
      %v1309 = vmax.f32 %v963, %v1173
      %v1310 = vmax.f32 %v971, %v1175
      %v1311 = vmax.f32 %v979, %v1177
      %v1312 = vmax.f32 %v978, %v1179
      %v1313 = vmax.f32 %v980, %v1181
      %v1314 = vmax.f32 %v988, %v1183
      %v1315 = vmax.f32 %v996, %v1185
      %v1316 = vmax.f32 %v995, %v1187
      %v1317 = vmax.f32 %v997, %v1189
      %v1320 = vunpack.c.l.s4 1983009808
      %v1321 = vunpack.c.0.s8 %v1320
      %v1322 = vlaneseq
      %v1323 = vshrl.u32 %v1322, 7
      %v1324 = vsub.s32 %v1321, %v1323
      %v1325 = vrot.slane 0.0, %v1324
      %v1327 = vunpack.c.l.s4 1983009808
      %v1328 = vunpack.c.0.s8 %v1327
      %v1329 = vlaneseq
      %v1330 = vshrl.u32 %v1329, 7
      %v1331 = vsub.s32 %v1328, %v1330
      %v1332 = vrot.slane %v733, %v1331
      %v1334 = vunpack.c.l.s4 1983009808
      %v1335 = vunpack.c.0.s8 %v1334
      %v1336 = vlaneseq
      %v1337 = vshrl.u32 %v1336, 7
      %v1338 = vsub.s32 %v1335, %v1337
      %v1339 = vrot.slane %v741, %v1338
      %v1341 = vunpack.c.l.s4 1983009808
      %v1342 = vunpack.c.0.s8 %v1341
      %v1343 = vlaneseq
      %v1344 = vshrl.u32 %v1343, 7
      %v1345 = vsub.s32 %v1342, %v1344
      %v1346 = vrot.slane %v740, %v1345
      %v1348 = vunpack.c.l.s4 1983009808
      %v1349 = vunpack.c.0.s8 %v1348
      %v1350 = vlaneseq
      %v1351 = vshrl.u32 %v1350, 7
      %v1352 = vsub.s32 %v1349, %v1351
      %v1353 = vrot.slane %v742, %v1352
      %v1355 = vunpack.c.l.s4 1983009808
      %v1356 = vunpack.c.0.s8 %v1355
      %v1357 = vlaneseq
      %v1358 = vshrl.u32 %v1357, 7
      %v1359 = vsub.s32 %v1356, %v1358
      %v1360 = vrot.slane %v750, %v1359
      %v1362 = vunpack.c.l.s4 1983009808
      %v1363 = vunpack.c.0.s8 %v1362
      %v1364 = vlaneseq
      %v1365 = vshrl.u32 %v1364, 7
      %v1366 = vsub.s32 %v1363, %v1365
      %v1367 = vrot.slane %v758, %v1366
      %v1369 = vunpack.c.l.s4 1983009808
      %v1370 = vunpack.c.0.s8 %v1369
      %v1371 = vlaneseq
      %v1372 = vshrl.u32 %v1371, 7
      %v1373 = vsub.s32 %v1370, %v1372
      %v1374 = vrot.slane %v757, %v1373
      %v1376 = vunpack.c.l.s4 1983009808
      %v1377 = vunpack.c.0.s8 %v1376
      %v1378 = vlaneseq
      %v1379 = vshrl.u32 %v1378, 7
      %v1380 = vsub.s32 %v1377, %v1379
      %v1381 = vrot.slane %v767, %v1380
      %v1383 = vunpack.c.l.s4 1983009808
      %v1384 = vunpack.c.0.s8 %v1383
      %v1385 = vlaneseq
      %v1386 = vshrl.u32 %v1385, 7
      %v1387 = vsub.s32 %v1384, %v1386
      %v1388 = vrot.slane %v775, %v1387
      %v1390 = vunpack.c.l.s4 1983009808
      %v1391 = vunpack.c.0.s8 %v1390
      %v1392 = vlaneseq
      %v1393 = vshrl.u32 %v1392, 7
      %v1394 = vsub.s32 %v1391, %v1393
      %v1395 = vrot.slane %v774, %v1394
      %v1397 = vunpack.c.l.s4 1983009808
      %v1398 = vunpack.c.0.s8 %v1397
      %v1399 = vlaneseq
      %v1400 = vshrl.u32 %v1399, 7
      %v1401 = vsub.s32 %v1398, %v1400
      %v1402 = vrot.slane %v776, %v1401
      %v1404 = vunpack.c.l.s4 1983009808
      %v1405 = vunpack.c.0.s8 %v1404
      %v1406 = vlaneseq
      %v1407 = vshrl.u32 %v1406, 7
      %v1408 = vsub.s32 %v1405, %v1407
      %v1409 = vrot.slane %v784, %v1408
      %v1411 = vunpack.c.l.s4 1983009808
      %v1412 = vunpack.c.0.s8 %v1411
      %v1413 = vlaneseq
      %v1414 = vshrl.u32 %v1413, 7
      %v1415 = vsub.s32 %v1412, %v1414
      %v1416 = vrot.slane %v792, %v1415
      %v1418 = vunpack.c.l.s4 1983009808
      %v1419 = vunpack.c.0.s8 %v1418
      %v1420 = vlaneseq
      %v1421 = vshrl.u32 %v1420, 7
      %v1422 = vsub.s32 %v1419, %v1421
      %v1423 = vrot.slane %v791, %v1422
      %v1425 = vunpack.c.l.s4 1983009808
      %v1426 = vunpack.c.0.s8 %v1425
      %v1427 = vlaneseq
      %v1428 = vshrl.u32 %v1427, 7
      %v1429 = vsub.s32 %v1426, %v1428
      %v1430 = vrot.slane %v801, %v1429
      %v1432 = vunpack.c.l.s4 1983009808
      %v1433 = vunpack.c.0.s8 %v1432
      %v1434 = vlaneseq
      %v1435 = vshrl.u32 %v1434, 7
      %v1436 = vsub.s32 %v1433, %v1435
      %v1437 = vrot.slane %v809, %v1436
      %v1439 = vunpack.c.l.s4 1983009808
      %v1440 = vunpack.c.0.s8 %v1439
      %v1441 = vlaneseq
      %v1442 = vshrl.u32 %v1441, 7
      %v1443 = vsub.s32 %v1440, %v1442
      %v1444 = vrot.slane %v808, %v1443
      %v1446 = vunpack.c.l.s4 1983009808
      %v1447 = vunpack.c.0.s8 %v1446
      %v1448 = vlaneseq
      %v1449 = vshrl.u32 %v1448, 7
      %v1450 = vsub.s32 %v1447, %v1449
      %v1451 = vrot.slane %v810, %v1450
      %v1453 = vunpack.c.l.s4 1983009808
      %v1454 = vunpack.c.0.s8 %v1453
      %v1455 = vlaneseq
      %v1456 = vshrl.u32 %v1455, 7
      %v1457 = vsub.s32 %v1454, %v1456
      %v1458 = vrot.slane %v818, %v1457
      %v1460 = vunpack.c.l.s4 1983009808
      %v1461 = vunpack.c.0.s8 %v1460
      %v1462 = vlaneseq
      %v1463 = vshrl.u32 %v1462, 7
      %v1464 = vsub.s32 %v1461, %v1463
      %v1465 = vrot.slane %v826, %v1464
      %v1467 = vunpack.c.l.s4 1983009808
      %v1468 = vunpack.c.0.s8 %v1467
      %v1469 = vlaneseq
      %v1470 = vshrl.u32 %v1469, 7
      %v1471 = vsub.s32 %v1468, %v1470
      %v1472 = vrot.slane %v825, %v1471
      %v1474 = vunpack.c.l.s4 1983009808
      %v1475 = vunpack.c.0.s8 %v1474
      %v1476 = vlaneseq
      %v1477 = vshrl.u32 %v1476, 7
      %v1478 = vsub.s32 %v1475, %v1477
      %v1479 = vrot.slane %v835, %v1478
      %v1481 = vunpack.c.l.s4 1983009808
      %v1482 = vunpack.c.0.s8 %v1481
      %v1483 = vlaneseq
      %v1484 = vshrl.u32 %v1483, 7
      %v1485 = vsub.s32 %v1482, %v1484
      %v1486 = vrot.slane %v843, %v1485
      %v1488 = vunpack.c.l.s4 1983009808
      %v1489 = vunpack.c.0.s8 %v1488
      %v1490 = vlaneseq
      %v1491 = vshrl.u32 %v1490, 7
      %v1492 = vsub.s32 %v1489, %v1491
      %v1493 = vrot.slane %v842, %v1492
      %v1495 = vunpack.c.l.s4 1983009808
      %v1496 = vunpack.c.0.s8 %v1495
      %v1497 = vlaneseq
      %v1498 = vshrl.u32 %v1497, 7
      %v1499 = vsub.s32 %v1496, %v1498
      %v1500 = vrot.slane %v844, %v1499
      %v1502 = vunpack.c.l.s4 1983009808
      %v1503 = vunpack.c.0.s8 %v1502
      %v1504 = vlaneseq
      %v1505 = vshrl.u32 %v1504, 7
      %v1506 = vsub.s32 %v1503, %v1505
      %v1507 = vrot.slane %v852, %v1506
      %v1509 = vunpack.c.l.s4 1983009808
      %v1510 = vunpack.c.0.s8 %v1509
      %v1511 = vlaneseq
      %v1512 = vshrl.u32 %v1511, 7
      %v1513 = vsub.s32 %v1510, %v1512
      %v1514 = vrot.slane %v860, %v1513
      %v1516 = vunpack.c.l.s4 1983009808
      %v1517 = vunpack.c.0.s8 %v1516
      %v1518 = vlaneseq
      %v1519 = vshrl.u32 %v1518, 7
      %v1520 = vsub.s32 %v1517, %v1519
      %v1521 = vrot.slane %v859, %v1520
      %v1523 = vunpack.c.l.s4 1983009808
      %v1524 = vunpack.c.0.s8 %v1523
      %v1525 = vlaneseq
      %v1526 = vshrl.u32 %v1525, 7
      %v1527 = vsub.s32 %v1524, %v1526
      %v1528 = vrot.slane %v869, %v1527
      %v1530 = vunpack.c.l.s4 1983009808
      %v1531 = vunpack.c.0.s8 %v1530
      %v1532 = vlaneseq
      %v1533 = vshrl.u32 %v1532, 7
      %v1534 = vsub.s32 %v1531, %v1533
      %v1535 = vrot.slane %v877, %v1534
      %v1537 = vunpack.c.l.s4 1983009808
      %v1538 = vunpack.c.0.s8 %v1537
      %v1539 = vlaneseq
      %v1540 = vshrl.u32 %v1539, 7
      %v1541 = vsub.s32 %v1538, %v1540
      %v1542 = vrot.slane %v876, %v1541
      %v1544 = vunpack.c.l.s4 1983009808
      %v1545 = vunpack.c.0.s8 %v1544
      %v1546 = vlaneseq
      %v1547 = vshrl.u32 %v1546, 7
      %v1548 = vsub.s32 %v1545, %v1547
      %v1549 = vrot.slane %v878, %v1548
      %v1551 = vunpack.c.l.s4 1983009808
      %v1552 = vunpack.c.0.s8 %v1551
      %v1553 = vlaneseq
      %v1554 = vshrl.u32 %v1553, 7
      %v1555 = vsub.s32 %v1552, %v1554
      %v1556 = vrot.slane %v886, %v1555
      %v1558 = vunpack.c.l.s4 1983009808
      %v1559 = vunpack.c.0.s8 %v1558
      %v1560 = vlaneseq
      %v1561 = vshrl.u32 %v1560, 7
      %v1562 = vsub.s32 %v1559, %v1561
      %v1563 = vrot.slane %v894, %v1562
      %v1565 = vunpack.c.l.s4 1983009808
      %v1566 = vunpack.c.0.s8 %v1565
      %v1567 = vlaneseq
      %v1568 = vshrl.u32 %v1567, 7
      %v1569 = vsub.s32 %v1566, %v1568
      %v1570 = vrot.slane %v893, %v1569
      %v1572 = vunpack.c.l.s4 1983009808
      %v1573 = vunpack.c.0.s8 %v1572
      %v1574 = vlaneseq
      %v1575 = vshrl.u32 %v1574, 7
      %v1576 = vsub.s32 %v1573, %v1575
      %v1577 = vrot.slane %v903, %v1576
      %v1579 = vunpack.c.l.s4 1983009808
      %v1580 = vunpack.c.0.s8 %v1579
      %v1581 = vlaneseq
      %v1582 = vshrl.u32 %v1581, 7
      %v1583 = vsub.s32 %v1580, %v1582
      %v1584 = vrot.slane %v911, %v1583
      %v1586 = vunpack.c.l.s4 1983009808
      %v1587 = vunpack.c.0.s8 %v1586
      %v1588 = vlaneseq
      %v1589 = vshrl.u32 %v1588, 7
      %v1590 = vsub.s32 %v1587, %v1589
      %v1591 = vrot.slane %v910, %v1590
      %v1593 = vunpack.c.l.s4 1983009808
      %v1594 = vunpack.c.0.s8 %v1593
      %v1595 = vlaneseq
      %v1596 = vshrl.u32 %v1595, 7
      %v1597 = vsub.s32 %v1594, %v1596
      %v1598 = vrot.slane %v912, %v1597
      %v1600 = vunpack.c.l.s4 1983009808
      %v1601 = vunpack.c.0.s8 %v1600
      %v1602 = vlaneseq
      %v1603 = vshrl.u32 %v1602, 7
      %v1604 = vsub.s32 %v1601, %v1603
      %v1605 = vrot.slane %v920, %v1604
      %v1607 = vunpack.c.l.s4 1983009808
      %v1608 = vunpack.c.0.s8 %v1607
      %v1609 = vlaneseq
      %v1610 = vshrl.u32 %v1609, 7
      %v1611 = vsub.s32 %v1608, %v1610
      %v1612 = vrot.slane %v928, %v1611
      %v1614 = vunpack.c.l.s4 1983009808
      %v1615 = vunpack.c.0.s8 %v1614
      %v1616 = vlaneseq
      %v1617 = vshrl.u32 %v1616, 7
      %v1618 = vsub.s32 %v1615, %v1617
      %v1619 = vrot.slane %v927, %v1618
      %v1621 = vunpack.c.l.s4 1983009808
      %v1622 = vunpack.c.0.s8 %v1621
      %v1623 = vlaneseq
      %v1624 = vshrl.u32 %v1623, 7
      %v1625 = vsub.s32 %v1622, %v1624
      %v1626 = vrot.slane %v937, %v1625
      %v1628 = vunpack.c.l.s4 1983009808
      %v1629 = vunpack.c.0.s8 %v1628
      %v1630 = vlaneseq
      %v1631 = vshrl.u32 %v1630, 7
      %v1632 = vsub.s32 %v1629, %v1631
      %v1633 = vrot.slane %v945, %v1632
      %v1635 = vunpack.c.l.s4 1983009808
      %v1636 = vunpack.c.0.s8 %v1635
      %v1637 = vlaneseq
      %v1638 = vshrl.u32 %v1637, 7
      %v1639 = vsub.s32 %v1636, %v1638
      %v1640 = vrot.slane %v944, %v1639
      %v1642 = vunpack.c.l.s4 1983009808
      %v1643 = vunpack.c.0.s8 %v1642
      %v1644 = vlaneseq
      %v1645 = vshrl.u32 %v1644, 7
      %v1646 = vsub.s32 %v1643, %v1645
      %v1647 = vrot.slane %v946, %v1646
      %v1649 = vunpack.c.l.s4 1983009808
      %v1650 = vunpack.c.0.s8 %v1649
      %v1651 = vlaneseq
      %v1652 = vshrl.u32 %v1651, 7
      %v1653 = vsub.s32 %v1650, %v1652
      %v1654 = vrot.slane %v954, %v1653
      %v1656 = vunpack.c.l.s4 1983009808
      %v1657 = vunpack.c.0.s8 %v1656
      %v1658 = vlaneseq
      %v1659 = vshrl.u32 %v1658, 7
      %v1660 = vsub.s32 %v1657, %v1659
      %v1661 = vrot.slane %v962, %v1660
      %v1663 = vunpack.c.l.s4 1983009808
      %v1664 = vunpack.c.0.s8 %v1663
      %v1665 = vlaneseq
      %v1666 = vshrl.u32 %v1665, 7
      %v1667 = vsub.s32 %v1664, %v1666
      %v1668 = vrot.slane %v961, %v1667
      %v1670 = vunpack.c.l.s4 1983009808
      %v1671 = vunpack.c.0.s8 %v1670
      %v1672 = vlaneseq
      %v1673 = vshrl.u32 %v1672, 7
      %v1674 = vsub.s32 %v1671, %v1673
      %v1675 = vrot.slane %v971, %v1674
      %v1677 = vunpack.c.l.s4 1983009808
      %v1678 = vunpack.c.0.s8 %v1677
      %v1679 = vlaneseq
      %v1680 = vshrl.u32 %v1679, 7
      %v1681 = vsub.s32 %v1678, %v1680
      %v1682 = vrot.slane %v979, %v1681
      %v1684 = vunpack.c.l.s4 1983009808
      %v1685 = vunpack.c.0.s8 %v1684
      %v1686 = vlaneseq
      %v1687 = vshrl.u32 %v1686, 7
      %v1688 = vsub.s32 %v1685, %v1687
      %v1689 = vrot.slane %v978, %v1688
      %v1691 = vunpack.c.l.s4 1983009808
      %v1692 = vunpack.c.0.s8 %v1691
      %v1693 = vlaneseq
      %v1694 = vshrl.u32 %v1693, 7
      %v1695 = vsub.s32 %v1692, %v1694
      %v1696 = vrot.slane %v980, %v1695
      %v1698 = vunpack.c.l.s4 1983009808
      %v1699 = vunpack.c.0.s8 %v1698
      %v1700 = vlaneseq
      %v1701 = vshrl.u32 %v1700, 7
      %v1702 = vsub.s32 %v1699, %v1701
      %v1703 = vrot.slane %v988, %v1702
      %v1705 = vunpack.c.l.s4 1983009808
      %v1706 = vunpack.c.0.s8 %v1705
      %v1707 = vlaneseq
      %v1708 = vshrl.u32 %v1707, 7
      %v1709 = vsub.s32 %v1706, %v1708
      %v1710 = vrot.slane %v996, %v1709
      %v1712 = vunpack.c.l.s4 1983009808
      %v1713 = vunpack.c.0.s8 %v1712
      %v1714 = vlaneseq
      %v1715 = vshrl.u32 %v1714, 7
      %v1716 = vsub.s32 %v1713, %v1715
      %v1717 = vrot.slane %v995, %v1716
      %v1718 = vrot.slane %v1325, 7
      %v1719 = vrot.slane %v1718, 2
      %v1720 = vrot.slane %v1332, 7
      %v1721 = vrot.slane %v1720, 2
      %v1722 = vrot.slane %v1339, 7
      %v1723 = vrot.slane %v1722, 2
      %v1724 = vrot.slane %v1346, 7
      %v1725 = vrot.slane %v1724, 2
      %v1726 = vrot.slane %v1353, 7
      %v1727 = vrot.slane %v1726, 2
      %v1728 = vrot.slane %v1360, 7
      %v1729 = vrot.slane %v1728, 2
      %v1730 = vrot.slane %v1367, 7
      %v1731 = vrot.slane %v1730, 2
      %v1732 = vrot.slane %v1374, 7
      %v1733 = vrot.slane %v1732, 2
      %v1734 = vrot.slane %v1381, 7
      %v1735 = vrot.slane %v1734, 2
      %v1736 = vrot.slane %v1388, 7
      %v1737 = vrot.slane %v1736, 2
      %v1738 = vrot.slane %v1395, 7
      %v1739 = vrot.slane %v1738, 2
      %v1740 = vrot.slane %v1402, 7
      %v1741 = vrot.slane %v1740, 2
      %v1742 = vrot.slane %v1409, 7
      %v1743 = vrot.slane %v1742, 2
      %v1744 = vrot.slane %v1416, 7
      %v1745 = vrot.slane %v1744, 2
      %v1746 = vrot.slane %v1423, 7
      %v1747 = vrot.slane %v1746, 2
      %v1748 = vrot.slane %v1430, 7
      %v1749 = vrot.slane %v1748, 2
      %v1750 = vrot.slane %v1437, 7
      %v1751 = vrot.slane %v1750, 2
      %v1752 = vrot.slane %v1444, 7
      %v1753 = vrot.slane %v1752, 2
      %v1754 = vrot.slane %v1451, 7
      %v1755 = vrot.slane %v1754, 2
      %v1756 = vrot.slane %v1458, 7
      %v1757 = vrot.slane %v1756, 2
      %v1758 = vrot.slane %v1465, 7
      %v1759 = vrot.slane %v1758, 2
      %v1760 = vrot.slane %v1472, 7
      %v1761 = vrot.slane %v1760, 2
      %v1762 = vrot.slane %v1479, 7
      %v1763 = vrot.slane %v1762, 2
      %v1764 = vrot.slane %v1486, 7
      %v1765 = vrot.slane %v1764, 2
      %v1766 = vrot.slane %v1493, 7
      %v1767 = vrot.slane %v1766, 2
      %v1768 = vrot.slane %v1500, 7
      %v1769 = vrot.slane %v1768, 2
      %v1770 = vrot.slane %v1507, 7
      %v1771 = vrot.slane %v1770, 2
      %v1772 = vrot.slane %v1514, 7
      %v1773 = vrot.slane %v1772, 2
      %v1774 = vrot.slane %v1521, 7
      %v1775 = vrot.slane %v1774, 2
      %v1776 = vrot.slane %v1528, 7
      %v1777 = vrot.slane %v1776, 2
      %v1778 = vrot.slane %v1535, 7
      %v1779 = vrot.slane %v1778, 2
      %v1780 = vrot.slane %v1542, 7
      %v1781 = vrot.slane %v1780, 2
      %v1782 = vrot.slane %v1549, 7
      %v1783 = vrot.slane %v1782, 2
      %v1784 = vrot.slane %v1556, 7
      %v1785 = vrot.slane %v1784, 2
      %v1786 = vrot.slane %v1563, 7
      %v1787 = vrot.slane %v1786, 2
      %v1788 = vrot.slane %v1570, 7
      %v1789 = vrot.slane %v1788, 2
      %v1790 = vrot.slane %v1577, 7
      %v1791 = vrot.slane %v1790, 2
      %v1792 = vrot.slane %v1584, 7
      %v1793 = vrot.slane %v1792, 2
      %v1794 = vrot.slane %v1591, 7
      %v1795 = vrot.slane %v1794, 2
      %v1796 = vrot.slane %v1598, 7
      %v1797 = vrot.slane %v1796, 2
      %v1798 = vrot.slane %v1605, 7
      %v1799 = vrot.slane %v1798, 2
      %v1800 = vrot.slane %v1612, 7
      %v1801 = vrot.slane %v1800, 2
      %v1802 = vrot.slane %v1619, 7
      %v1803 = vrot.slane %v1802, 2
      %v1804 = vrot.slane %v1626, 7
      %v1805 = vrot.slane %v1804, 2
      %v1806 = vrot.slane %v1633, 7
      %v1807 = vrot.slane %v1806, 2
      %v1808 = vrot.slane %v1640, 7
      %v1809 = vrot.slane %v1808, 2
      %v1810 = vrot.slane %v1647, 7
      %v1811 = vrot.slane %v1810, 2
      %v1812 = vrot.slane %v1654, 7
      %v1813 = vrot.slane %v1812, 2
      %v1814 = vrot.slane %v1661, 7
      %v1815 = vrot.slane %v1814, 2
      %v1816 = vrot.slane %v1668, 7
      %v1817 = vrot.slane %v1816, 2
      %v1818 = vrot.slane %v1675, 7
      %v1819 = vrot.slane %v1818, 2
      %v1820 = vrot.slane %v1682, 7
      %v1821 = vrot.slane %v1820, 2
      %v1822 = vrot.slane %v1689, 7
      %v1823 = vrot.slane %v1822, 2
      %v1824 = vrot.slane %v1696, 7
      %v1825 = vrot.slane %v1824, 2
      %v1826 = vrot.slane %v1703, 7
      %v1827 = vrot.slane %v1826, 2
      %v1828 = vrot.slane %v1710, 7
      %v1829 = vrot.slane %v1828, 2
      %v1830 = vrot.slane %v1717, 7
      %v1831 = vrot.slane %v1830, 2
      %v1889 = vmax.f32 %v1254, %v1719
      %v1890 = vmax.f32 %v1255, %v1721
      %v1891 = vmax.f32 %v1256, %v1723
      %v1892 = vmax.f32 %v1257, %v1725
      %v1893 = vmax.f32 %v1258, %v1727
      %v1894 = vmax.f32 %v1259, %v1729
      %v1895 = vmax.f32 %v1260, %v1731
      %v1896 = vmax.f32 %v1261, %v1733
      %v1897 = vmax.f32 %v1262, %v1719
      %v1898 = vmax.f32 %v1263, %v1735
      %v1899 = vmax.f32 %v1264, %v1737
      %v1900 = vmax.f32 %v1265, %v1739
      %v1901 = vmax.f32 %v1266, %v1741
      %v1902 = vmax.f32 %v1267, %v1743
      %v1903 = vmax.f32 %v1268, %v1745
      %v1904 = vmax.f32 %v1269, %v1747
      %v1905 = vmax.f32 %v1270, %v1719
      %v1906 = vmax.f32 %v1271, %v1749
      %v1907 = vmax.f32 %v1272, %v1751
      %v1908 = vmax.f32 %v1273, %v1753
      %v1909 = vmax.f32 %v1274, %v1755
      %v1910 = vmax.f32 %v1275, %v1757
      %v1911 = vmax.f32 %v1276, %v1759
      %v1912 = vmax.f32 %v1277, %v1761
      %v1913 = vmax.f32 %v1278, %v1719
      %v1914 = vmax.f32 %v1279, %v1763
      %v1915 = vmax.f32 %v1280, %v1765
      %v1916 = vmax.f32 %v1281, %v1767
      %v1917 = vmax.f32 %v1282, %v1769
      %v1918 = vmax.f32 %v1283, %v1771
      %v1919 = vmax.f32 %v1284, %v1773
      %v1920 = vmax.f32 %v1285, %v1775
      %v1921 = vmax.f32 %v1286, %v1719
      %v1922 = vmax.f32 %v1287, %v1777
      %v1923 = vmax.f32 %v1288, %v1779
      %v1924 = vmax.f32 %v1289, %v1781
      %v1925 = vmax.f32 %v1290, %v1783
      %v1926 = vmax.f32 %v1291, %v1785
      %v1927 = vmax.f32 %v1292, %v1787
      %v1928 = vmax.f32 %v1293, %v1789
      %v1929 = vmax.f32 %v1294, %v1719
      %v1930 = vmax.f32 %v1295, %v1791
      %v1931 = vmax.f32 %v1296, %v1793
      %v1932 = vmax.f32 %v1297, %v1795
      %v1933 = vmax.f32 %v1298, %v1797
      %v1934 = vmax.f32 %v1299, %v1799
      %v1935 = vmax.f32 %v1300, %v1801
      %v1936 = vmax.f32 %v1301, %v1803
      %v1937 = vmax.f32 %v1302, %v1719
      %v1938 = vmax.f32 %v1303, %v1805
      %v1939 = vmax.f32 %v1304, %v1807
      %v1940 = vmax.f32 %v1305, %v1809
      %v1941 = vmax.f32 %v1306, %v1811
      %v1942 = vmax.f32 %v1307, %v1813
      %v1943 = vmax.f32 %v1308, %v1815
      %v1944 = vmax.f32 %v1309, %v1817
      %v1945 = vmax.f32 %v1310, %v1719
      %v1946 = vmax.f32 %v1311, %v1819
      %v1947 = vmax.f32 %v1312, %v1821
      %v1948 = vmax.f32 %v1313, %v1823
      %v1949 = vmax.f32 %v1314, %v1825
      %v1950 = vmax.f32 %v1315, %v1827
      %v1951 = vmax.f32 %v1316, %v1829
      %v1952 = vmax.f32 %v1317, %v1831
      %vm2017 = vcmask 1044484
      %v2018 = vsel %vm2017, %v1889, %v1889
      %vm2019 = vcmask 1046534
      %v2020 = vsel %vm2019, %v1889, %v2018
      %v2021 = vrot.slane %v1890, 7
      %vm2022 = vcmask 1041409
      %v2023 = vsel %vm2022, %v2021, %v2020
      %vm2024 = vcmask 1043459
      %v2025 = vsel %vm2024, %v2021, %v2023
      %vm2026 = vcmask 1045509
      %v2027 = vsel %vm2026, %v2021, %v2025
      %vm2028 = vcmask 1047559
      %v2029 = vsel %vm2028, %v2021, %v2027
      %v2030 = vsel %vm2017, %v1891, %v1891
      %v2031 = vsel %vm2019, %v1891, %v2030
      %v2032 = vrot.slane %v1892, 7
      %v2033 = vsel %vm2022, %v2032, %v2031
      %v2034 = vsel %vm2024, %v2032, %v2033
      %v2035 = vsel %vm2026, %v2032, %v2034
      %v2036 = vsel %vm2028, %v2032, %v2035
      %v2037 = vsel %vm2017, %v1893, %v1893
      %v2038 = vsel %vm2019, %v1893, %v2037
      %v2039 = vrot.slane %v1894, 7
      %v2040 = vsel %vm2022, %v2039, %v2038
      %v2041 = vsel %vm2024, %v2039, %v2040
      %v2042 = vsel %vm2026, %v2039, %v2041
      %v2043 = vsel %vm2028, %v2039, %v2042
      %v2044 = vsel %vm2017, %v1895, %v1895
      %v2045 = vsel %vm2019, %v1895, %v2044
      %v2046 = vrot.slane %v1896, 7
      %v2047 = vsel %vm2022, %v2046, %v2045
      %v2048 = vsel %vm2024, %v2046, %v2047
      %v2049 = vsel %vm2026, %v2046, %v2048
      %v2050 = vsel %vm2028, %v2046, %v2049
      %v2051 = vsel %vm2017, %v1897, %v1897
      %v2052 = vsel %vm2019, %v1897, %v2051
      %v2053 = vrot.slane %v1898, 7
      %v2054 = vsel %vm2022, %v2053, %v2052
      %v2055 = vsel %vm2024, %v2053, %v2054
      %v2056 = vsel %vm2026, %v2053, %v2055
      %v2057 = vsel %vm2028, %v2053, %v2056
      %v2058 = vsel %vm2017, %v1899, %v1899
      %v2059 = vsel %vm2019, %v1899, %v2058
      %v2060 = vrot.slane %v1900, 7
      %v2061 = vsel %vm2022, %v2060, %v2059
      %v2062 = vsel %vm2024, %v2060, %v2061
      %v2063 = vsel %vm2026, %v2060, %v2062
      %v2064 = vsel %vm2028, %v2060, %v2063
      %v2065 = vsel %vm2017, %v1901, %v1901
      %v2066 = vsel %vm2019, %v1901, %v2065
      %v2067 = vrot.slane %v1902, 7
      %v2068 = vsel %vm2022, %v2067, %v2066
      %v2069 = vsel %vm2024, %v2067, %v2068
      %v2070 = vsel %vm2026, %v2067, %v2069
      %v2071 = vsel %vm2028, %v2067, %v2070
      %v2072 = vsel %vm2017, %v1903, %v1903
      %v2073 = vsel %vm2019, %v1903, %v2072
      %v2074 = vrot.slane %v1904, 7
      %v2075 = vsel %vm2022, %v2074, %v2073
      %v2076 = vsel %vm2024, %v2074, %v2075
      %v2077 = vsel %vm2026, %v2074, %v2076
      %v2078 = vsel %vm2028, %v2074, %v2077
      %v2079 = vsel %vm2017, %v1905, %v1905
      %v2080 = vsel %vm2019, %v1905, %v2079
      %v2081 = vrot.slane %v1906, 7
      %v2082 = vsel %vm2022, %v2081, %v2080
      %v2083 = vsel %vm2024, %v2081, %v2082
      %v2084 = vsel %vm2026, %v2081, %v2083
      %v2085 = vsel %vm2028, %v2081, %v2084
      %v2086 = vsel %vm2017, %v1907, %v1907
      %v2087 = vsel %vm2019, %v1907, %v2086
      %v2088 = vrot.slane %v1908, 7
      %v2089 = vsel %vm2022, %v2088, %v2087
      %v2090 = vsel %vm2024, %v2088, %v2089
      %v2091 = vsel %vm2026, %v2088, %v2090
      %v2092 = vsel %vm2028, %v2088, %v2091
      %v2093 = vsel %vm2017, %v1909, %v1909
      %v2094 = vsel %vm2019, %v1909, %v2093
      %v2095 = vrot.slane %v1910, 7
      %v2096 = vsel %vm2022, %v2095, %v2094
      %v2097 = vsel %vm2024, %v2095, %v2096
      %v2098 = vsel %vm2026, %v2095, %v2097
      %v2099 = vsel %vm2028, %v2095, %v2098
      %v2100 = vsel %vm2017, %v1911, %v1911
      %v2101 = vsel %vm2019, %v1911, %v2100
      %v2102 = vrot.slane %v1912, 7
      %v2103 = vsel %vm2022, %v2102, %v2101
      %v2104 = vsel %vm2024, %v2102, %v2103
      %v2105 = vsel %vm2026, %v2102, %v2104
      %v2106 = vsel %vm2028, %v2102, %v2105
      %v2107 = vsel %vm2017, %v1913, %v1913
      %v2108 = vsel %vm2019, %v1913, %v2107
      %v2109 = vrot.slane %v1914, 7
      %v2110 = vsel %vm2022, %v2109, %v2108
      %v2111 = vsel %vm2024, %v2109, %v2110
      %v2112 = vsel %vm2026, %v2109, %v2111
      %v2113 = vsel %vm2028, %v2109, %v2112
      %v2114 = vsel %vm2017, %v1915, %v1915
      %v2115 = vsel %vm2019, %v1915, %v2114
      %v2116 = vrot.slane %v1916, 7
      %v2117 = vsel %vm2022, %v2116, %v2115
      %v2118 = vsel %vm2024, %v2116, %v2117
      %v2119 = vsel %vm2026, %v2116, %v2118
      %v2120 = vsel %vm2028, %v2116, %v2119
      %v2121 = vsel %vm2017, %v1917, %v1917
      %v2122 = vsel %vm2019, %v1917, %v2121
      %v2123 = vrot.slane %v1918, 7
      %v2124 = vsel %vm2022, %v2123, %v2122
      %v2125 = vsel %vm2024, %v2123, %v2124
      %v2126 = vsel %vm2026, %v2123, %v2125
      %v2127 = vsel %vm2028, %v2123, %v2126
      %v2128 = vsel %vm2017, %v1919, %v1919
      %v2129 = vsel %vm2019, %v1919, %v2128
      %v2130 = vrot.slane %v1920, 7
      %v2131 = vsel %vm2022, %v2130, %v2129
      %v2132 = vsel %vm2024, %v2130, %v2131
      %v2133 = vsel %vm2026, %v2130, %v2132
      %v2134 = vsel %vm2028, %v2130, %v2133
      %v2135 = vsel %vm2017, %v1921, %v1921
      %v2136 = vsel %vm2019, %v1921, %v2135
      %v2137 = vrot.slane %v1922, 7
      %v2138 = vsel %vm2022, %v2137, %v2136
      %v2139 = vsel %vm2024, %v2137, %v2138
      %v2140 = vsel %vm2026, %v2137, %v2139
      %v2141 = vsel %vm2028, %v2137, %v2140
      %v2142 = vsel %vm2017, %v1923, %v1923
      %v2143 = vsel %vm2019, %v1923, %v2142
      %v2144 = vrot.slane %v1924, 7
      %v2145 = vsel %vm2022, %v2144, %v2143
      %v2146 = vsel %vm2024, %v2144, %v2145
      %v2147 = vsel %vm2026, %v2144, %v2146
      %v2148 = vsel %vm2028, %v2144, %v2147
      %v2149 = vsel %vm2017, %v1925, %v1925
      %v2150 = vsel %vm2019, %v1925, %v2149
      %v2151 = vrot.slane %v1926, 7
      %v2152 = vsel %vm2022, %v2151, %v2150
      %v2153 = vsel %vm2024, %v2151, %v2152
      %v2154 = vsel %vm2026, %v2151, %v2153
      %v2155 = vsel %vm2028, %v2151, %v2154
      %v2156 = vsel %vm2017, %v1927, %v1927
      %v2157 = vsel %vm2019, %v1927, %v2156
      %v2158 = vrot.slane %v1928, 7
      %v2159 = vsel %vm2022, %v2158, %v2157
      %v2160 = vsel %vm2024, %v2158, %v2159
      %v2161 = vsel %vm2026, %v2158, %v2160
      %v2162 = vsel %vm2028, %v2158, %v2161
      %v2163 = vsel %vm2017, %v1929, %v1929
      %v2164 = vsel %vm2019, %v1929, %v2163
      %v2165 = vrot.slane %v1930, 7
      %v2166 = vsel %vm2022, %v2165, %v2164
      %v2167 = vsel %vm2024, %v2165, %v2166
      %v2168 = vsel %vm2026, %v2165, %v2167
      %v2169 = vsel %vm2028, %v2165, %v2168
      %v2170 = vsel %vm2017, %v1931, %v1931
      %v2171 = vsel %vm2019, %v1931, %v2170
      %v2172 = vrot.slane %v1932, 7
      %v2173 = vsel %vm2022, %v2172, %v2171
      %v2174 = vsel %vm2024, %v2172, %v2173
      %v2175 = vsel %vm2026, %v2172, %v2174
      %v2176 = vsel %vm2028, %v2172, %v2175
      %v2177 = vsel %vm2017, %v1933, %v1933
      %v2178 = vsel %vm2019, %v1933, %v2177
      %v2179 = vrot.slane %v1934, 7
      %v2180 = vsel %vm2022, %v2179, %v2178
      %v2181 = vsel %vm2024, %v2179, %v2180
      %v2182 = vsel %vm2026, %v2179, %v2181
      %v2183 = vsel %vm2028, %v2179, %v2182
      %v2184 = vsel %vm2017, %v1935, %v1935
      %v2185 = vsel %vm2019, %v1935, %v2184
      %v2186 = vrot.slane %v1936, 7
      %v2187 = vsel %vm2022, %v2186, %v2185
      %v2188 = vsel %vm2024, %v2186, %v2187
      %v2189 = vsel %vm2026, %v2186, %v2188
      %v2190 = vsel %vm2028, %v2186, %v2189
      %v2191 = vsel %vm2017, %v1937, %v1937
      %v2192 = vsel %vm2019, %v1937, %v2191
      %v2193 = vrot.slane %v1938, 7
      %v2194 = vsel %vm2022, %v2193, %v2192
      %v2195 = vsel %vm2024, %v2193, %v2194
      %v2196 = vsel %vm2026, %v2193, %v2195
      %v2197 = vsel %vm2028, %v2193, %v2196
      %v2198 = vsel %vm2017, %v1939, %v1939
      %v2199 = vsel %vm2019, %v1939, %v2198
      %v2200 = vrot.slane %v1940, 7
      %v2201 = vsel %vm2022, %v2200, %v2199
      %v2202 = vsel %vm2024, %v2200, %v2201
      %v2203 = vsel %vm2026, %v2200, %v2202
      %v2204 = vsel %vm2028, %v2200, %v2203
      %v2205 = vsel %vm2017, %v1941, %v1941
      %v2206 = vsel %vm2019, %v1941, %v2205
      %v2207 = vrot.slane %v1942, 7
      %v2208 = vsel %vm2022, %v2207, %v2206
      %v2209 = vsel %vm2024, %v2207, %v2208
      %v2210 = vsel %vm2026, %v2207, %v2209
      %v2211 = vsel %vm2028, %v2207, %v2210
      %v2212 = vsel %vm2017, %v1943, %v1943
      %v2213 = vsel %vm2019, %v1943, %v2212
      %v2214 = vrot.slane %v1944, 7
      %v2215 = vsel %vm2022, %v2214, %v2213
      %v2216 = vsel %vm2024, %v2214, %v2215
      %v2217 = vsel %vm2026, %v2214, %v2216
      %v2218 = vsel %vm2028, %v2214, %v2217
      %v2219 = vsel %vm2017, %v1945, %v1945
      %v2220 = vsel %vm2019, %v1945, %v2219
      %v2221 = vrot.slane %v1946, 7
      %v2222 = vsel %vm2022, %v2221, %v2220
      %v2223 = vsel %vm2024, %v2221, %v2222
      %v2224 = vsel %vm2026, %v2221, %v2223
      %v2225 = vsel %vm2028, %v2221, %v2224
      %v2226 = vsel %vm2017, %v1947, %v1947
      %v2227 = vsel %vm2019, %v1947, %v2226
      %v2228 = vrot.slane %v1948, 7
      %v2229 = vsel %vm2022, %v2228, %v2227
      %v2230 = vsel %vm2024, %v2228, %v2229
      %v2231 = vsel %vm2026, %v2228, %v2230
      %v2232 = vsel %vm2028, %v2228, %v2231
      %v2233 = vsel %vm2017, %v1949, %v1949
      %v2234 = vsel %vm2019, %v1949, %v2233
      %v2235 = vrot.slane %v1950, 7
      %v2236 = vsel %vm2022, %v2235, %v2234
      %v2237 = vsel %vm2024, %v2235, %v2236
      %v2238 = vsel %vm2026, %v2235, %v2237
      %v2239 = vsel %vm2028, %v2235, %v2238
      %v2240 = vsel %vm2017, %v1951, %v1951
      %v2241 = vsel %vm2019, %v1951, %v2240
      %v2242 = vrot.slane %v1952, 7
      %v2243 = vsel %vm2022, %v2242, %v2241
      %v2244 = vsel %vm2024, %v2242, %v2243
      %v2245 = vsel %vm2026, %v2242, %v2244
      %v2246 = vsel %vm2028, %v2242, %v2245
      %v2279 = vcombine.low %v2029, %v2057
      %v2281 = vunpack.c.l.s4 1934713408
      %v2282 = vunpack.c.0.s8 %v2281
      %v2283 = vlaneseq
      %v2284 = vshrl.u32 %v2283, 7
      %v2285 = vsub.s32 %v2282, %v2284
      %v2286 = vrot.slane %v2279, %v2285
      %v2287 = vcombine.high %v2286, 0.0
      %v2288 = vcombine.low %v2085, %v2113
      %v2290 = vunpack.c.l.s4 1934713408
      %v2291 = vunpack.c.0.s8 %v2290
      %v2292 = vlaneseq
      %v2293 = vshrl.u32 %v2292, 7
      %v2294 = vsub.s32 %v2291, %v2293
      %v2295 = vrot.slane %v2288, %v2294
      %v2296 = vcombine.high %v2295, 0.0
      %v2297 = vcombine.low %v2141, %v2169
      %v2299 = vunpack.c.l.s4 1934713408
      %v2300 = vunpack.c.0.s8 %v2299
      %v2301 = vlaneseq
      %v2302 = vshrl.u32 %v2301, 7
      %v2303 = vsub.s32 %v2300, %v2302
      %v2304 = vrot.slane %v2297, %v2303
      %v2305 = vcombine.high %v2304, 0.0
      %v2306 = vcombine.low %v2197, %v2225
      %v2308 = vunpack.c.l.s4 1934713408
      %v2309 = vunpack.c.0.s8 %v2308
      %v2310 = vlaneseq
      %v2311 = vshrl.u32 %v2310, 7
      %v2312 = vsub.s32 %v2309, %v2311
      %v2313 = vrot.slane %v2306, %v2312
      %v2314 = vcombine.high %v2313, 0.0
      %v2315 = vcombine.low %v2036, %v2064
      %v2317 = vunpack.c.l.s4 1934713408
      %v2318 = vunpack.c.0.s8 %v2317
      %v2319 = vlaneseq
      %v2320 = vshrl.u32 %v2319, 7
      %v2321 = vsub.s32 %v2318, %v2320
      %v2322 = vrot.slane %v2315, %v2321
      %v2323 = vcombine.high %v2322, 0.0
      %v2324 = vcombine.low %v2092, %v2120
      %v2326 = vunpack.c.l.s4 1934713408
      %v2327 = vunpack.c.0.s8 %v2326
      %v2328 = vlaneseq
      %v2329 = vshrl.u32 %v2328, 7
      %v2330 = vsub.s32 %v2327, %v2329
      %v2331 = vrot.slane %v2324, %v2330
      %v2332 = vcombine.high %v2331, 0.0
      %v2333 = vcombine.low %v2148, %v2176
      %v2335 = vunpack.c.l.s4 1934713408
      %v2336 = vunpack.c.0.s8 %v2335
      %v2337 = vlaneseq
      %v2338 = vshrl.u32 %v2337, 7
      %v2339 = vsub.s32 %v2336, %v2338
      %v2340 = vrot.slane %v2333, %v2339
      %v2341 = vcombine.high %v2340, 0.0
      %v2342 = vcombine.low %v2204, %v2232
      %v2344 = vunpack.c.l.s4 1934713408
      %v2345 = vunpack.c.0.s8 %v2344
      %v2346 = vlaneseq
      %v2347 = vshrl.u32 %v2346, 7
      %v2348 = vsub.s32 %v2345, %v2347
      %v2349 = vrot.slane %v2342, %v2348
      %v2350 = vcombine.high %v2349, 0.0
      %v2351 = vcombine.low %v2043, %v2071
      %v2353 = vunpack.c.l.s4 1934713408
      %v2354 = vunpack.c.0.s8 %v2353
      %v2355 = vlaneseq
      %v2356 = vshrl.u32 %v2355, 7
      %v2357 = vsub.s32 %v2354, %v2356
      %v2358 = vrot.slane %v2351, %v2357
      %v2359 = vcombine.high %v2358, 0.0
      %v2360 = vcombine.low %v2099, %v2127
      %v2362 = vunpack.c.l.s4 1934713408
      %v2363 = vunpack.c.0.s8 %v2362
      %v2364 = vlaneseq
      %v2365 = vshrl.u32 %v2364, 7
      %v2366 = vsub.s32 %v2363, %v2365
      %v2367 = vrot.slane %v2360, %v2366
      %v2368 = vcombine.high %v2367, 0.0
      %v2369 = vcombine.low %v2155, %v2183
      %v2371 = vunpack.c.l.s4 1934713408
      %v2372 = vunpack.c.0.s8 %v2371
      %v2373 = vlaneseq
      %v2374 = vshrl.u32 %v2373, 7
      %v2375 = vsub.s32 %v2372, %v2374
      %v2376 = vrot.slane %v2369, %v2375
      %v2377 = vcombine.high %v2376, 0.0
      %v2378 = vcombine.low %v2211, %v2239
      %v2380 = vunpack.c.l.s4 1934713408
      %v2381 = vunpack.c.0.s8 %v2380
      %v2382 = vlaneseq
      %v2383 = vshrl.u32 %v2382, 7
      %v2384 = vsub.s32 %v2381, %v2383
      %v2385 = vrot.slane %v2378, %v2384
      %v2386 = vcombine.high %v2385, 0.0
      %v2387 = vcombine.low %v2050, %v2078
      %v2389 = vunpack.c.l.s4 1934713408
      %v2390 = vunpack.c.0.s8 %v2389
      %v2391 = vlaneseq
      %v2392 = vshrl.u32 %v2391, 7
      %v2393 = vsub.s32 %v2390, %v2392
      %v2394 = vrot.slane %v2387, %v2393
      %v2395 = vcombine.high %v2394, 0.0
      %v2396 = vcombine.low %v2106, %v2134
      %v2398 = vunpack.c.l.s4 1934713408
      %v2399 = vunpack.c.0.s8 %v2398
      %v2400 = vlaneseq
      %v2401 = vshrl.u32 %v2400, 7
      %v2402 = vsub.s32 %v2399, %v2401
      %v2403 = vrot.slane %v2396, %v2402
      %v2404 = vcombine.high %v2403, 0.0
      %v2405 = vcombine.low %v2162, %v2190
      %v2407 = vunpack.c.l.s4 1934713408
      %v2408 = vunpack.c.0.s8 %v2407
      %v2409 = vlaneseq
      %v2410 = vshrl.u32 %v2409, 7
      %v2411 = vsub.s32 %v2408, %v2410
      %v2412 = vrot.slane %v2405, %v2411
      %v2413 = vcombine.high %v2412, 0.0
      %v2414 = vcombine.low %v2218, %v2246
      %v2416 = vunpack.c.l.s4 1934713408
      %v2417 = vunpack.c.0.s8 %v2416
      %v2418 = vlaneseq
      %v2419 = vshrl.u32 %v2418, 7
      %v2420 = vsub.s32 %v2417, %v2419
      %v2421 = vrot.slane %v2414, %v2420
      %v2422 = vcombine.high %v2421, 0.0
      %v2427 = vcombine.low %v2286, %v2295
      %v2428 = vcombine.low %v2304, %v2313
      %v2430 = vunpack.c.l.s4 1983009808
      %v2431 = vunpack.c.0.s8 %v2430
      %v2432 = vlaneseq
      %v2433 = vshrl.u32 %v2432, 7
      %v2434 = vsub.s32 %v2431, %v2433
      %v2435 = vrot.slane %v2427, %v2434
      %v2437 = vunpack.c.l.s4 1983009808
      %v2438 = vunpack.c.0.s8 %v2437
      %v2439 = vlaneseq
      %v2440 = vshrl.u32 %v2439, 7
      %v2441 = vsub.s32 %v2438, %v2440
      %v2442 = vrot.slane %v2428, %v2441
      %v2443 = vcombine.low %v2435, %v2442
      %v2449 = vcombine.low %v2287, %v2296
      %v2450 = vcombine.low %v2305, %v2314
      %v2452 = vunpack.c.l.s4 1983009808
      %v2453 = vunpack.c.0.s8 %v2452
      %v2454 = vlaneseq
      %v2455 = vshrl.u32 %v2454, 7
      %v2456 = vsub.s32 %v2453, %v2455
      %v2457 = vrot.slane %v2449, %v2456
      %v2459 = vunpack.c.l.s4 1983009808
      %v2460 = vunpack.c.0.s8 %v2459
      %v2461 = vlaneseq
      %v2462 = vshrl.u32 %v2461, 7
      %v2463 = vsub.s32 %v2460, %v2462
      %v2464 = vrot.slane %v2450, %v2463
      %v2465 = vcombine.low %v2457, %v2464
      %2466 = vrot.lane.b32.xlu0 %v2465, 16
      %v2467 = vpop.permute.xlu0 %2466
      %v2473 = vcombine.low %v2322, %v2331
      %v2474 = vcombine.low %v2340, %v2349
      %v2476 = vunpack.c.l.s4 1983009808
      %v2477 = vunpack.c.0.s8 %v2476
      %v2478 = vlaneseq
      %v2479 = vshrl.u32 %v2478, 7
      %v2480 = vsub.s32 %v2477, %v2479
      %v2481 = vrot.slane %v2473, %v2480
      %v2483 = vunpack.c.l.s4 1983009808
      %v2484 = vunpack.c.0.s8 %v2483
      %v2485 = vlaneseq
      %v2486 = vshrl.u32 %v2485, 7
      %v2487 = vsub.s32 %v2484, %v2486
      %v2488 = vrot.slane %v2474, %v2487
      %v2489 = vcombine.low %v2481, %v2488
      %2490 = vrot.lane.b32.xlu0 %v2489, 32
      %v2491 = vpop.permute.xlu0 %2490
      %v2497 = vcombine.low %v2323, %v2332
      %v2498 = vcombine.low %v2341, %v2350
      %v2500 = vunpack.c.l.s4 1983009808
      %v2501 = vunpack.c.0.s8 %v2500
      %v2502 = vlaneseq
      %v2503 = vshrl.u32 %v2502, 7
      %v2504 = vsub.s32 %v2501, %v2503
      %v2505 = vrot.slane %v2497, %v2504
      %v2507 = vunpack.c.l.s4 1983009808
      %v2508 = vunpack.c.0.s8 %v2507
      %v2509 = vlaneseq
      %v2510 = vshrl.u32 %v2509, 7
      %v2511 = vsub.s32 %v2508, %v2510
      %v2512 = vrot.slane %v2498, %v2511
      %v2513 = vcombine.low %v2505, %v2512
      %2514 = vrot.lane.b32.xlu0 %v2513, 48
      %v2515 = vpop.permute.xlu0 %2514
      %v2521 = vcombine.low %v2358, %v2367
      %v2522 = vcombine.low %v2376, %v2385
      %v2524 = vunpack.c.l.s4 1983009808
      %v2525 = vunpack.c.0.s8 %v2524
      %v2526 = vlaneseq
      %v2527 = vshrl.u32 %v2526, 7
      %v2528 = vsub.s32 %v2525, %v2527
      %v2529 = vrot.slane %v2521, %v2528
      %v2531 = vunpack.c.l.s4 1983009808
      %v2532 = vunpack.c.0.s8 %v2531
      %v2533 = vlaneseq
      %v2534 = vshrl.u32 %v2533, 7
      %v2535 = vsub.s32 %v2532, %v2534
      %v2536 = vrot.slane %v2522, %v2535
      %v2537 = vcombine.low %v2529, %v2536
      %2538 = vrot.lane.b32.xlu0 %v2537, 64
      %v2539 = vpop.permute.xlu0 %2538
      %v2545 = vcombine.low %v2359, %v2368
      %v2546 = vcombine.low %v2377, %v2386
      %v2548 = vunpack.c.l.s4 1983009808
      %v2549 = vunpack.c.0.s8 %v2548
      %v2550 = vlaneseq
      %v2551 = vshrl.u32 %v2550, 7
      %v2552 = vsub.s32 %v2549, %v2551
      %v2553 = vrot.slane %v2545, %v2552
      %v2555 = vunpack.c.l.s4 1983009808
      %v2556 = vunpack.c.0.s8 %v2555
      %v2557 = vlaneseq
      %v2558 = vshrl.u32 %v2557, 7
      %v2559 = vsub.s32 %v2556, %v2558
      %v2560 = vrot.slane %v2546, %v2559
      %v2561 = vcombine.low %v2553, %v2560
      %2562 = vrot.lane.b32.xlu0 %v2561, 80
      %v2563 = vpop.permute.xlu0 %2562
      %v2569 = vcombine.low %v2394, %v2403
      %v2570 = vcombine.low %v2412, %v2421
      %v2572 = vunpack.c.l.s4 1983009808
      %v2573 = vunpack.c.0.s8 %v2572
      %v2574 = vlaneseq
      %v2575 = vshrl.u32 %v2574, 7
      %v2576 = vsub.s32 %v2573, %v2575
      %v2577 = vrot.slane %v2569, %v2576
      %v2579 = vunpack.c.l.s4 1983009808
      %v2580 = vunpack.c.0.s8 %v2579
      %v2581 = vlaneseq
      %v2582 = vshrl.u32 %v2581, 7
      %v2583 = vsub.s32 %v2580, %v2582
      %v2584 = vrot.slane %v2570, %v2583
      %v2585 = vcombine.low %v2577, %v2584
      %2586 = vrot.lane.b32.xlu0 %v2585, 96
      %v2587 = vpop.permute.xlu0 %2586
      %v2593 = vcombine.low %v2395, %v2404
      %v2594 = vcombine.low %v2413, %v2422
      %v2596 = vunpack.c.l.s4 1983009808
      %v2597 = vunpack.c.0.s8 %v2596
      %v2598 = vlaneseq
      %v2599 = vshrl.u32 %v2598, 7
      %v2600 = vsub.s32 %v2597, %v2599
      %v2601 = vrot.slane %v2593, %v2600
      %v2603 = vunpack.c.l.s4 1983009808
      %v2604 = vunpack.c.0.s8 %v2603
      %v2605 = vlaneseq
      %v2606 = vshrl.u32 %v2605, 7
      %v2607 = vsub.s32 %v2604, %v2606
      %v2608 = vrot.slane %v2594, %v2607
      %v2609 = vcombine.low %v2601, %v2608
      %2610 = vrot.lane.b32.xlu0 %v2609, 112
      %v2611 = vpop.permute.xlu0 %2610
      %vm2613 = vcmask 130048
      %v2614 = vsel %vm2613, %v2443, %v2467
      %vm2615 = vcmask 261120
      %v2616 = vsel %vm2615, %v2614, %v2491
      %vm2617 = vcmask 392192
      %v2618 = vsel %vm2617, %v2616, %v2515
      %vm2619 = vcmask 523264
      %v2620 = vsel %vm2619, %v2618, %v2539
      %vm2621 = vcmask 654336
      %v2622 = vsel %vm2621, %v2620, %v2563
      %vm2623 = vcmask 785408
      %v2624 = vsel %vm2623, %v2622, %v2587
      %vm2625 = vcmask 916480
      %v2626 = vsel %vm2625, %v2624, %v2611
      %2627 = vst [vmem:[%s168] sm:$0xff] %v2626
      %p2628 = scmp.lt.s32.totalorder %s14, 1
      %s2629 = scalar_select %p2628, %s14, 1
      %s2630 = smul.addr %s2629, 8
      %s2631 = scalar_lea.vmem %s3, %s2630
      // Predicated region
      $region33: #{head_block_forward.1} parent=31 // pred_check
        %p2632 = pneg %p100
      $region34: #{head_block_forward.1} parent=31 // pred_check_branch
        %2634 = sbr.rel (%p2632) target = $region36
      $region35: #{head_block_forward.1} parent=31 // pred_region
        _
      $region36: #{head_block_forward.1} parent=31 // pred_fallthru
        _
    $region32: #{head_block_forward.1} parent=5 // pred_fallthru
      _
    %p2635 = scmp.le.s32.totalorder 2, %s9
    // Predicated region
    $region37: #{head_block_forward.1} parent=5 // pred_check
      %p2636 = pneg %p2635
    $region38: #{head_block_forward.1} parent=5 // pred_check_branch
      %2638 = sbr.rel (%p2636) target = $region40
    $region39: #{head_block_forward.1} parent=5 // pred_region
      %s2639 = ssub.s32 %s9, 2
      // Predicated region
      $region41: #{head_block_forward.1} parent=39 // pred_check
        %p2640 = pneg %p106
      $region42: #{head_block_forward.1} parent=39 // pred_check_branch
        %2642 = sbr.rel (%p2640) target = $region44
      $region43: #{head_block_forward.1} parent=39 // pred_region
        %p2643 = scmp.lt.s32.totalorder %s15, 1
        %s2644 = scalar_select %p2643, %s15, 1
        %s2645 = smul.addr %s2644, 8
        %s2646 = scalar_lea.vmem %s3, %s2645
      $region44: #{head_block_forward.1} parent=39 // pred_fallthru
        _
    $region40: #{head_block_forward.1} parent=5 // pred_fallthru
      _
  $region6: #{head_block_forward.1} parent=0 // loop_footer
    %s13 = sadd.s32 1, %s9
  $region7: #{head_block_forward.1} parent=0 // loop_footer_branch
    %8 = sbr.rel target = $region3
  $region8: #{head_block_forward.1} parent=0 // loop_exit
    _

</llo_original>
